<compile_context>
chip_gen: v5e
topology: v5e:2x2
jax: 0.10.0
libtpu: 0.0.40
codegen_flags: <defaults>
</compile_context>

<pallas_src>
import jax
import jax.numpy as jnp
import numpy as np
from jax.experimental import pallas as pl
from jax.experimental.pallas import tpu as pltpu

_CSEG = 2  # PVNet segmentation head is binary (background / object)


# ----------------------------------------------------------------------------
# generation-aware tile / VMEM budgets
# ----------------------------------------------------------------------------
def _vmem_budgets():
    """Return (per-tile footprint budget, scoped vmem limit) in bytes."""
    try:
        cap = int(pltpu.get_tpu_info().vmem_capacity_bytes)
    except Exception:
        cap = 64 * 1024 * 1024                      # conservative: assume v7x
    if cap >= 128 * 1024 * 1024:                    # v5e / v6e: 128 MiB physical
        return 56 * 1024 * 1024, 96 * 1024 * 1024
    return 26 * 1024 * 1024, 48 * 1024 * 1024       # v7x: 64 MiB physical


def _pick_tile_h(H, W, streamed_ch, temp_ch, budget_bytes):
    """Largest multiple-of-8 divisor of H whose per-tile footprint
    (2x double-buffered streams + live in-kernel temporaries) fits the budget."""
    per_row = W * 4 * (2 * streamed_ch + temp_ch)
    cands = [h for h in range(8, H + 1, 8) if H % h == 0]
    if not cands:
        return H                                    # irregular H: full-extent block
    best = cands[0]
    for h in cands:
        if h * per_row <= budget_bytes:
            best = h
    return best


def _conv_row(xs, w_sm, b_sm, k, cin):
    """One output channel of the 1x1 conv as VPU broadcast-MACs.

    Cin / Cout are tiny (4 / 2+2K), so a handful of scalar-broadcast FMAs per
    channel beats a degenerate MXU matmul; weights/bias are scalar SMEM reads.
    """
    acc = xs[0] * w_sm[k, 0] + b_sm[k, 0]
    for c in range(1, cin):
        acc = acc + xs[c] * w_sm[k, c]
    return acc


# ----------------------------------------------------------------------------
# fused kernel: net head + loss reductions (single HBM pass)
# ----------------------------------------------------------------------------
def _make_fused_kernel(cin, cseg, kc):
    def kernel(wseg_sm, bseg_sm, wvote_sm, bvote_sm, x_ref, vert_ref, mask_ref,
               seg_ref, vote_ref, sl1_ref, wsum_ref, ce_ref):
        # per-batch loss partials: zero them on this batch element's first H-tile
        @pl.when(pl.program_id(1) == 0)
        def _init():
            sl1_ref[...] = jnp.zeros_like(sl1_ref)
            wsum_ref[...] = jnp.zeros_like(wsum_ref)
            ce_ref[...] = jnp.zeros_like(ce_ref)

        # raw int mask cast in-kernel (no wrapper-side XLA cast pass)
        mask_f = mask_ref[...].astype(jnp.float32)          # (tile_h, W)

        xs = [x_ref[c].astype(jnp.float32) for c in range(cin)]

        # segmentation logits, written straight into the NCHW output block
        seg0 = _conv_row(xs, wseg_sm, bseg_sm, 0, cin)
        seg1 = _conv_row(xs, wseg_sm, bseg_sm, 1, cin)
        seg_ref[0] = seg0.astype(seg_ref.dtype)
        seg_ref[1] = seg1.astype(seg_ref.dtype)

        # vote channels: conv fused per-channel with its masked branchless
        # Huber term (beta=1) so only one channel is live at a time
        sl1_pix = jnp.zeros_like(mask_f)
        for j in range(kc):
            v = _conv_row(xs, wvote_sm, bvote_sm, j, cin)
            vote_ref[j] = v.astype(vote_ref.dtype)
            d = (v - vert_ref[j].astype(jnp.float32)) * mask_f
            ad = jnp.abs(d)
            m = jnp.minimum(ad, 1.0)
            sl1_pix = sl1_pix + m * (ad - 0.5 * m)

        # 2-class cross entropy with target = mask, as a stable softplus of the
        # logit margin (one exp + one log per pixel, no int target stream)
        z = jnp.where(mask_f != 0.0, seg0 - seg1, seg1 - seg0)
        ce_pix = jnp.maximum(z, 0.0) + jnp.log(1.0 + jnp.exp(-jnp.abs(z)))

        # resident (1,1) per-batch accumulators (written back once per batch block)
        sl1_ref[...] += jnp.sum(sl1_pix, keepdims=True)
        wsum_ref[...] += jnp.sum(mask_f, keepdims=True)
        ce_ref[...] += jnp.sum(ce_pix, keepdims=True)

    return kernel


def fused_net_and_loss(w_seg, b_seg, w_vote, b_vote, inp, vertex, mask, *,
                       tile_h=None):
    B, Cin, H, W = inp.shape
    Kc = vertex.shape[1]
    Cseg = _CSEG

    budget, vmem_limit = _vmem_budgets()
    streamed_ch = Cin + Kc + 1 + Cseg + Kc          # f32-equivalent channels / pixel
    temp_ch = Cin + 10                              # live working set in the body
    if tile_h is None:
        tile_h = _pick_tile_h(H, W, streamed_ch, temp_ch, budget)
    assert H % tile_h == 0 and (tile_h % 8 == 0 or tile_h == H)
    grid = (B, H // tile_h)

    smem_spec = pl.BlockSpec(memory_space=pltpu.MemorySpace.SMEM)
    part = jax.ShapeDtypeStruct((B, 1, 1), jnp.float32)
    part_spec = pl.BlockSpec((None, 1, 1), lambda bi, ti: (bi, 0, 0))

    return pl.pallas_call(
        _make_fused_kernel(Cin, Cseg, Kc),
        grid=grid,
        in_specs=[
            smem_spec,                                                    # w_seg  (Cseg, Cin)
            smem_spec,                                                    # b_seg  (Cseg, 1)
            smem_spec,                                                    # w_vote (Kc, Cin)
            smem_spec,                                                    # b_vote (Kc, 1)
            pl.BlockSpec((None, Cin, tile_h, W), lambda bi, ti: (bi, 0, ti, 0)),
            pl.BlockSpec((None, Kc, tile_h, W), lambda bi, ti: (bi, 0, ti, 0)),
            pl.BlockSpec((None, tile_h, W), lambda bi, ti: (bi, ti, 0)),
        ],
        out_specs=(
            pl.BlockSpec((None, Cseg, tile_h, W), lambda bi, ti: (bi, 0, ti, 0)),
            pl.BlockSpec((None, Kc, tile_h, W), lambda bi, ti: (bi, 0, ti, 0)),
            part_spec, part_spec, part_spec,
        ),
        out_shape=(
            jax.ShapeDtypeStruct((B, Cseg, H, W), jnp.float32),
            jax.ShapeDtypeStruct((B, Kc, H, W), jnp.float32),
            part, part, part,
        ),
        compiler_params=pltpu.CompilerParams(
            # batch axis is parallel (per-batch partials -> no cross-core race);
            # H-tile axis revisits the accumulators, so it stays arbitrary.
            dimension_semantics=("parallel", "arbitrary"),
            vmem_limit_bytes=vmem_limit,
        ),
    )(w_seg, b_seg, w_vote, b_vote, inp, vertex, mask)


# ----------------------------------------------------------------------------
# conv-only kernel for the 'pose_test' early-exit branch
# ----------------------------------------------------------------------------
def _make_conv_kernel(cin, cseg, kc):
    def kernel(wseg_sm, bseg_sm, wvote_sm, bvote_sm, x_ref, seg_ref, vote_ref):
        xs = [x_ref[c].astype(jnp.float32) for c in range(cin)]
        for k in range(cseg):
            seg_ref[k] = _conv_row(xs, wseg_sm, bseg_sm, k, cin).astype(seg_ref.dtype)
        for j in range(kc):
            vote_ref[j] = _conv_row(xs, wvote_sm, bvote_sm, j, cin).astype(vote_ref.dtype)

    return kernel


def synthetic_net(w_seg, b_seg, w_vote, b_vote, inp, *, tile_h=None):
    B, Cin, H, W = inp.shape
    Cseg = _CSEG
    Kc = w_vote.shape[0]

    budget, vmem_limit = _vmem_budgets()
    streamed_ch = Cin + Cseg + Kc
    temp_ch = Cin + 4
    if tile_h is None:
        tile_h = _pick_tile_h(H, W, streamed_ch, temp_ch, budget)
    assert H % tile_h == 0 and (tile_h % 8 == 0 or tile_h == H)
    grid = (B, H // tile_h)

    smem_spec = pl.BlockSpec(memory_space=pltpu.MemorySpace.SMEM)
    return pl.pallas_call(
        _make_conv_kernel(Cin, Cseg, Kc),
        grid=grid,
        in_specs=[
            smem_spec, smem_spec, smem_spec, smem_spec,
            pl.BlockSpec((None, Cin, tile_h, W), lambda bi, ti: (bi, 0, ti, 0)),
        ],
        out_specs=(
            pl.BlockSpec((None, Cseg, tile_h, W), lambda bi, ti: (bi, 0, ti, 0)),
            pl.BlockSpec((None, Kc, tile_h, W), lambda bi, ti: (bi, 0, ti, 0)),
        ),
        out_shape=(
            jax.ShapeDtypeStruct((B, Cseg, H, W), jnp.float32),
            jax.ShapeDtypeStruct((B, Kc, H, W), jnp.float32),
        ),
        compiler_params=pltpu.CompilerParams(
            dimension_semantics=("parallel", "parallel"),
            vmem_limit_bytes=vmem_limit,
        ),
    )(w_seg, b_seg, w_vote, b_vote, inp)


# ----------------------------------------------------------------------------
# NetworkWrapper.forward equivalent
# ----------------------------------------------------------------------------
def network_wrapper_forward(params, batch, *, tile_h=None):
    inp = batch['inp']
    B, Cin, H, W = inp.shape
    w = params['w'].astype(jnp.float32)          # (Cin, Cout), Cout = 2 + 2K
    b = params['b'].astype(jnp.float32)          # (Cout,)
    Kc = w.shape[1] - _CSEG

    # split / transpose the tiny head params once (glue on a (Cin, Cout) array)
    w_seg = w[:, :_CSEG].T                       # (Cseg, Cin)
    w_vote = w[:, _CSEG:].T                      # (Kc,  Cin)
    b_seg = b[:_CSEG].reshape(_CSEG, 1)
    b_vote = b[_CSEG:].reshape(Kc, 1)

    # TODO(synk): the real PVNet backbone (ResNet18 + upsampling head) is external
    # to NetworkWrapper; a pointwise 1x1-conv head stands in for `self.net` here.

    # ----- 'pose_test' early-exit branch (dict-key control flow, plain Python) -----
    if 'pose_test' in batch['meta']:
        seg_dim, vote_dim = synthetic_net(w_seg, b_seg, w_vote, b_vote, inp,
                                          tile_h=tile_h)
        output = {'seg_dim': seg_dim, 'vote_dim': vote_dim}
        return output, jnp.asarray(0, dtype=jnp.int32), {}, {}

    # raw (int) mask goes straight into the kernel; cast happens on the VPU inside
    seg_dim, vote_dim, sl1_part, wsum_part, ce_part = fused_net_and_loss(
        w_seg, b_seg, w_vote, b_vote, inp, batch['vertex'], batch['mask'],
        tile_h=tile_h)

    output = {'seg_dim': seg_dim, 'vote_dim': vote_dim}

    # combine the per-batch partials (tiny (B,1,1) arrays)
    sl1_sum = jnp.sum(sl1_part)
    w_sum = jnp.sum(wsum_part)
    ce_sum = jnp.sum(ce_part)

    # vote_loss = smooth_l1_sum / weight.sum() / vertex.size(1)
    # (an all-background mask gives w_sum == 0 -> inf, matching the torch reference)
    vote_loss = sl1_sum / w_sum / Kc
    seg_loss = ce_sum / (B * H * W)              # CrossEntropyLoss mean reduction
    loss = vote_loss + seg_loss

    scalar_stats = {'vote_loss': vote_loss, 'seg_loss': seg_loss, 'loss': loss}
    image_stats = {}
    return output, loss, scalar_stats, image_stats


# ----------------------------------------------------------------------------
# float64 numpy reference of the same math (for the correctness check)
# ----------------------------------------------------------------------------
def _reference_forward(w, b, inp, vertex, mask):
    w = np.asarray(w, np.float64)
    b = np.asarray(b, np.float64)
    inp = np.asarray(inp, np.float64)
    vertex = np.asarray(vertex, np.float64)
    mask = np.asarray(mask)

    out = np.einsum('bchw,ck->bkhw', inp, w) + b[None, :, None, None]
    seg = out[:, :_CSEG]
    vote = out[:, _CSEG:]
    mf = mask.astype(np.float64)[:, None]
    d = vote * mf - vertex * mf
    ad = np.abs(d)
    sl1 = np.sum(np.where(ad < 1.0, 0.5 * d * d, ad - 0.5))
    vote_loss = sl1 / mf.sum() / vote.shape[1]

    s0, s1 = seg[:, 0], seg[:, 1]
    mx = np.maximum(s0, s1)
    lse = mx + np.log(np.exp(s0 - mx) + np.exp(s1 - mx))
    picked = np.where(mask != 0, s1, s0)
    seg_loss = np.mean(lse - picked)
    return (seg.astype(np.float32), vote.astype(np.float32),
            float(vote_loss), float(seg_loss))


if __name__ == "__main__":
    key = jax.random.PRNGKey(0)
    kx, kv, km, kw, kb, kx2, kv2, km2 = jax.random.split(key, 8)

    B, Cin, H, W, K = 2, 4, 16, 16, 4            # K keypoints -> 2K vote channels
    Cout = _CSEG + 2 * K                          # seg(2) + vote(2K)

    inp = jax.random.normal(kx, (B, Cin, H, W), jnp.float32)
    vertex = jax.random.normal(kv, (B, 2 * K, H, W), jnp.float32)
    mask = (jax.random.uniform(km, (B, H, W)) > 0.5).astype(jnp.int32)

    params = {
        'w': 0.1 * jax.random.normal(kw, (Cin, Cout), jnp.float32),
        'b': 0.1 * jax.random.normal(kb, (Cout,), jnp.float32),
    }

    # ---- training path: fused net + loss kernel (tile_h=8 -> 2x2 grid, exercising
    # the per-batch accumulators across multiple H-tiles) ----
    batch = {'inp': inp, 'vertex': vertex, 'mask': mask, 'meta': {}}
    output, loss, scalar_stats, image_stats = network_wrapper_forward(
        params, batch, tile_h=8)
    jax.block_until_ready(loss)
    jax.block_until_ready(output['seg_dim'])
    jax.block_until_ready(output['vote_dim'])

    seg_r, vote_r, vl_r, sl_r = _reference_forward(
        params['w'], params['b'], inp, vertex, mask)
    np.testing.assert_allclose(np.asarray(output['seg_dim']), seg_r,
                               rtol=1e-3, atol=1e-3)
    np.testing.assert_allclose(np.asarray(output['vote_dim']), vote_r,
                               rtol=1e-3, atol=1e-3)
    np.testing.assert_allclose(float(scalar_stats['vote_loss']), vl_r,
                               rtol=1e-3, atol=1e-3)
    np.testing.assert_allclose(float(scalar_stats['seg_loss']), sl_r,
                               rtol=1e-3, atol=1e-3)

    # ---- second training case: B=1, auto tile_h (single H-tile per batch) ----
    B2, H2, W2 = 1, 16, 128
    inp2 = jax.random.normal(kx2, (B2, Cin, H2, W2), jnp.float32)
    vertex2 = jax.random.normal(kv2, (B2, 2 * K, H2, W2), jnp.float32)
    mask2 = (jax.random.uniform(km2, (B2, H2, W2)) > 0.5).astype(jnp.int32)
    batch2 = {'inp': inp2, 'vertex': vertex2, 'mask': mask2, 'meta': {}}
    out2, loss2, stats2, _ = network_wrapper_forward(params, batch2)
    jax.block_until_ready(loss2)
    seg_r2, vote_r2, vl_r2, sl_r2 = _reference_forward(
        params['w'], params['b'], inp2, vertex2, mask2)
    np.testing.assert_allclose(np.asarray(out2['seg_dim']), seg_r2,
                               rtol=1e-3, atol=1e-3)
    np.testing.assert_allclose(np.asarray(out2['vote_dim']), vote_r2,
                               rtol=1e-3, atol=1e-3)
    np.testing.assert_allclose(float(stats2['vote_loss']), vl_r2,
                               rtol=1e-3, atol=1e-3)
    np.testing.assert_allclose(float(stats2['seg_loss']), sl_r2,
                               rtol=1e-3, atol=1e-3)

    # ---- 'pose_test' early-exit path: conv-only kernel, loss == 0 ----
    batch_pt = {'inp': inp, 'vertex': vertex, 'mask': mask,
                'meta': {'pose_test': True}}
    out_pt, loss_pt, _, _ = network_wrapper_forward(params, batch_pt, tile_h=8)
    jax.block_until_ready(out_pt['vote_dim'])
    assert int(loss_pt) == 0
    np.testing.assert_allclose(np.asarray(out_pt['seg_dim']), seg_r,
                               rtol=1e-3, atol=1e-3)

    print("KERNEL_OK")
</pallas_src>

<mosaic_0001>
module attributes {stable_mosaic.version = 11 : i64} {
  func.func @kernel(%arg0: i32, %arg1: i32, %arg2: memref<2x4xf32, #tpu.memory_space<smem>>, %arg3: memref<2x1xf32, #tpu.memory_space<smem>>, %arg4: memref<8x4xf32, #tpu.memory_space<smem>>, %arg5: memref<8x1xf32, #tpu.memory_space<smem>>, %arg6: memref<1x4x8x16xf32, #tpu.memory_space<vmem>>, %arg7: memref<1x8x8x16xf32, #tpu.memory_space<vmem>>, %arg8: memref<1x8x16xi32, #tpu.memory_space<vmem>>, %arg9: memref<1x2x8x16xf32, #tpu.memory_space<vmem>>, %arg10: memref<1x8x8x16xf32, #tpu.memory_space<vmem>>, %arg11: memref<1x1x1xf32, #tpu.memory_space<vmem>>, %arg12: memref<1x1x1xf32, #tpu.memory_space<vmem>>, %arg13: memref<1x1x1xf32, #tpu.memory_space<vmem>>) attributes {dimension_semantics = [#tpu.dimension_semantics<parallel>, #tpu.dimension_semantics<arbitrary>], iteration_bounds = array<i64: 2, 2>, scalar_prefetch = 0 : i64, scratch_operands = 0 : i64, tpu.core_type = #tpu.core_type<tc>, window_params = [{transform_indices = @transform_0, window_bounds = array<i64: 2, 4>}, {transform_indices = @transform_1, window_bounds = array<i64: 2, 1>}, {transform_indices = @transform_2, window_bounds = array<i64: 8, 4>}, {transform_indices = @transform_3, window_bounds = array<i64: 8, 1>}, {transform_indices = @transform_4, window_bounds = array<i64: 1, 4, 8, 16>}, {transform_indices = @transform_5, window_bounds = array<i64: 1, 8, 8, 16>}, {transform_indices = @transform_6, window_bounds = array<i64: 1, 8, 16>}, {transform_indices = @transform_7, window_bounds = array<i64: 1, 2, 8, 16>}, {transform_indices = @transform_8, window_bounds = array<i64: 1, 8, 8, 16>}, {transform_indices = @transform_9, window_bounds = array<i64: 1, 1, 1>}, {transform_indices = @transform_10, window_bounds = array<i64: 1, 1, 1>}, {transform_indices = @transform_11, window_bounds = array<i64: 1, 1, 1>}]} {
    %c0_i32 = arith.constant 0 : i32
    %0 = arith.cmpi eq, %arg1, %c0_i32 : i32
    %1 = arith.extui %0 : i1 to i32
    %c0_i32_0 = arith.constant 0 : i32
    %2 = arith.cmpi ne, %1, %c0_i32_0 : i32
    scf.if %2 {
      %cst_225 = arith.constant 0.000000e+00 : f32
      %369 = vector.broadcast %cst_225 : f32 to vector<1x1xf32>
      %c0_226 = arith.constant 0 : index
      %c0_227 = arith.constant 0 : index
      %c0_228 = arith.constant 0 : index
      %370 = vector.load %arg11[%c0_226, %c0_227, %c0_228] : memref<1x1x1xf32, #tpu.memory_space<vmem>>, vector<1x1x1xf32>
      %371 = vector.shape_cast %370 : vector<1x1x1xf32> to vector<1x1xf32>
      %372 = vector.shape_cast %369 : vector<1x1xf32> to vector<1x1x1xf32>
      tpu.vector_store %arg11[%c0_226, %c0_227, %c0_228], %372 {strides = array<i32>} : memref<1x1x1xf32, #tpu.memory_space<vmem>>, vector<1x1x1xf32>,
      %cst_229 = arith.constant 0.000000e+00 : f32
      %373 = vector.broadcast %cst_229 : f32 to vector<1x1xf32>
      %c0_230 = arith.constant 0 : index
      %c0_231 = arith.constant 0 : index
      %c0_232 = arith.constant 0 : index
      %374 = vector.load %arg12[%c0_230, %c0_231, %c0_232] : memref<1x1x1xf32, #tpu.memory_space<vmem>>, vector<1x1x1xf32>
      %375 = vector.shape_cast %374 : vector<1x1x1xf32> to vector<1x1xf32>
      %376 = vector.shape_cast %373 : vector<1x1xf32> to vector<1x1x1xf32>
      tpu.vector_store %arg12[%c0_230, %c0_231, %c0_232], %376 {strides = array<i32>} : memref<1x1x1xf32, #tpu.memory_space<vmem>>, vector<1x1x1xf32>,
      %cst_233 = arith.constant 0.000000e+00 : f32
      %377 = vector.broadcast %cst_233 : f32 to vector<1x1xf32>
      %c0_234 = arith.constant 0 : index
      %c0_235 = arith.constant 0 : index
      %c0_236 = arith.constant 0 : index
      %378 = vector.load %arg13[%c0_234, %c0_235, %c0_236] : memref<1x1x1xf32, #tpu.memory_space<vmem>>, vector<1x1x1xf32>
      %379 = vector.shape_cast %378 : vector<1x1x1xf32> to vector<1x1xf32>
      %380 = vector.shape_cast %377 : vector<1x1xf32> to vector<1x1x1xf32>
      tpu.vector_store %arg13[%c0_234, %c0_235, %c0_236], %380 {strides = array<i32>} : memref<1x1x1xf32, #tpu.memory_space<vmem>>, vector<1x1x1xf32>,
    } else {
    }
    %c0 = arith.constant 0 : index
    %c0_1 = arith.constant 0 : index
    %c0_2 = arith.constant 0 : index
    %3 = vector.load %arg8[%c0, %c0_1, %c0_2] : memref<1x8x16xi32, #tpu.memory_space<vmem>>, vector<1x8x16xi32>
    %4 = vector.shape_cast %3 : vector<1x8x16xi32> to vector<8x16xi32>
    %5 = arith.sitofp %4 : vector<8x16xi32> to vector<8x16xf32>
    %c0_3 = arith.constant 0 : index
    %c0_4 = arith.constant 0 : index
    %c0_5 = arith.constant 0 : index
    %c0_6 = arith.constant 0 : index
    %6 = vector.load %arg6[%c0_3, %c0_4, %c0_5, %c0_6] : memref<1x4x8x16xf32, #tpu.memory_space<vmem>>, vector<1x1x8x16xf32>
    %7 = vector.shape_cast %6 : vector<1x1x8x16xf32> to vector<8x16xf32>
    %c0_7 = arith.constant 0 : index
    %c1 = arith.constant 1 : index
    %c0_8 = arith.constant 0 : index
    %c0_9 = arith.constant 0 : index
    %8 = vector.load %arg6[%c0_7, %c1, %c0_8, %c0_9] : memref<1x4x8x16xf32, #tpu.memory_space<vmem>>, vector<1x1x8x16xf32>
    %9 = vector.shape_cast %8 : vector<1x1x8x16xf32> to vector<8x16xf32>
    %c0_10 = arith.constant 0 : index
    %c2 = arith.constant 2 : index
    %c0_11 = arith.constant 0 : index
    %c0_12 = arith.constant 0 : index
    %10 = vector.load %arg6[%c0_10, %c2, %c0_11, %c0_12] : memref<1x4x8x16xf32, #tpu.memory_space<vmem>>, vector<1x1x8x16xf32>
    %11 = vector.shape_cast %10 : vector<1x1x8x16xf32> to vector<8x16xf32>
    %c0_13 = arith.constant 0 : index
    %c3 = arith.constant 3 : index
    %c0_14 = arith.constant 0 : index
    %c0_15 = arith.constant 0 : index
    %12 = vector.load %arg6[%c0_13, %c3, %c0_14, %c0_15] : memref<1x4x8x16xf32, #tpu.memory_space<vmem>>, vector<1x1x8x16xf32>
    %13 = vector.shape_cast %12 : vector<1x1x8x16xf32> to vector<8x16xf32>
    %c0_16 = arith.constant 0 : index
    %c0_17 = arith.constant 0 : index
    %14 = memref.load %arg2[%c0_16, %c0_17] : memref<2x4xf32, #tpu.memory_space<smem>>
    %15 = vector.broadcast %14 : f32 to vector<8x16xf32>
    %16 = arith.mulf %7, %15 : vector<8x16xf32>
    %c0_18 = arith.constant 0 : index
    %c0_19 = arith.constant 0 : index
    %17 = memref.load %arg3[%c0_18, %c0_19] : memref<2x1xf32, #tpu.memory_space<smem>>
    %18 = vector.broadcast %17 : f32 to vector<8x16xf32>
    %19 = arith.addf %16, %18 : vector<8x16xf32>
    %c0_20 = arith.constant 0 : index
    %c1_21 = arith.constant 1 : index
    %20 = memref.load %arg2[%c0_20, %c1_21] : memref<2x4xf32, #tpu.memory_space<smem>>
    %21 = vector.broadcast %20 : f32 to vector<8x16xf32>
    %22 = arith.mulf %9, %21 : vector<8x16xf32>
    %23 = arith.addf %19, %22 : vector<8x16xf32>
    %c0_22 = arith.constant 0 : index
    %c2_23 = arith.constant 2 : index
    %24 = memref.load %arg2[%c0_22, %c2_23] : memref<2x4xf32, #tpu.memory_space<smem>>
    %25 = vector.broadcast %24 : f32 to vector<8x16xf32>
    %26 = arith.mulf %11, %25 : vector<8x16xf32>
    %27 = arith.addf %23, %26 : vector<8x16xf32>
    %c0_24 = arith.constant 0 : index
    %c3_25 = arith.constant 3 : index
    %28 = memref.load %arg2[%c0_24, %c3_25] : memref<2x4xf32, #tpu.memory_space<smem>>
    %29 = vector.broadcast %28 : f32 to vector<8x16xf32>
    %30 = arith.mulf %13, %29 : vector<8x16xf32>
    %31 = arith.addf %27, %30 : vector<8x16xf32>
    %c1_26 = arith.constant 1 : index
    %c0_27 = arith.constant 0 : index
    %32 = memref.load %arg2[%c1_26, %c0_27] : memref<2x4xf32, #tpu.memory_space<smem>>
    %33 = vector.broadcast %32 : f32 to vector<8x16xf32>
    %34 = arith.mulf %7, %33 : vector<8x16xf32>
    %c1_28 = arith.constant 1 : index
    %c0_29 = arith.constant 0 : index
    %35 = memref.load %arg3[%c1_28, %c0_29] : memref<2x1xf32, #tpu.memory_space<smem>>
    %36 = vector.broadcast %35 : f32 to vector<8x16xf32>
    %37 = arith.addf %34, %36 : vector<8x16xf32>
    %c1_30 = arith.constant 1 : index
    %c1_31 = arith.constant 1 : index
    %38 = memref.load %arg2[%c1_30, %c1_31] : memref<2x4xf32, #tpu.memory_space<smem>>
    %39 = vector.broadcast %38 : f32 to vector<8x16xf32>
    %40 = arith.mulf %9, %39 : vector<8x16xf32>
    %41 = arith.addf %37, %40 : vector<8x16xf32>
    %c1_32 = arith.constant 1 : index
    %c2_33 = arith.constant 2 : index
    %42 = memref.load %arg2[%c1_32, %c2_33] : memref<2x4xf32, #tpu.memory_space<smem>>
    %43 = vector.broadcast %42 : f32 to vector<8x16xf32>
    %44 = arith.mulf %11, %43 : vector<8x16xf32>
    %45 = arith.addf %41, %44 : vector<8x16xf32>
    %c1_34 = arith.constant 1 : index
    %c3_35 = arith.constant 3 : index
    %46 = memref.load %arg2[%c1_34, %c3_35] : memref<2x4xf32, #tpu.memory_space<smem>>
    %47 = vector.broadcast %46 : f32 to vector<8x16xf32>
    %48 = arith.mulf %13, %47 : vector<8x16xf32>
    %49 = arith.addf %45, %48 : vector<8x16xf32>
    %c0_36 = arith.constant 0 : index
    %c0_37 = arith.constant 0 : index
    %c0_38 = arith.constant 0 : index
    %c0_39 = arith.constant 0 : index
    %50 = vector.load %arg9[%c0_36, %c0_37, %c0_38, %c0_39] : memref<1x2x8x16xf32, #tpu.memory_space<vmem>>, vector<1x1x8x16xf32>
    %51 = vector.shape_cast %50 : vector<1x1x8x16xf32> to vector<8x16xf32>
    %52 = vector.shape_cast %31 : vector<8x16xf32> to vector<1x1x8x16xf32>
    tpu.vector_store %arg9[%c0_36, %c0_37, %c0_38, %c0_39], %52 {strides = array<i32>} : memref<1x2x8x16xf32, #tpu.memory_space<vmem>>, vector<1x1x8x16xf32>,
    %c0_40 = arith.constant 0 : index
    %c1_41 = arith.constant 1 : index
    %c0_42 = arith.constant 0 : index
    %c0_43 = arith.constant 0 : index
    %53 = vector.load %arg9[%c0_40, %c1_41, %c0_42, %c0_43] : memref<1x2x8x16xf32, #tpu.memory_space<vmem>>, vector<1x1x8x16xf32>
    %54 = vector.shape_cast %53 : vector<1x1x8x16xf32> to vector<8x16xf32>
    %55 = vector.shape_cast %49 : vector<8x16xf32> to vector<1x1x8x16xf32>
    tpu.vector_store %arg9[%c0_40, %c1_41, %c0_42, %c0_43], %55 {strides = array<i32>} : memref<1x2x8x16xf32, #tpu.memory_space<vmem>>, vector<1x1x8x16xf32>,
    %cst = arith.constant 0.000000e+00 : f32
    %56 = vector.broadcast %cst : f32 to vector<8x16xf32>
    %c0_44 = arith.constant 0 : index
    %c0_45 = arith.constant 0 : index
    %57 = memref.load %arg4[%c0_44, %c0_45] : memref<8x4xf32, #tpu.memory_space<smem>>
    %58 = vector.broadcast %57 : f32 to vector<8x16xf32>
    %59 = arith.mulf %7, %58 : vector<8x16xf32>
    %c0_46 = arith.constant 0 : index
    %c0_47 = arith.constant 0 : index
    %60 = memref.load %arg5[%c0_46, %c0_47] : memref<8x1xf32, #tpu.memory_space<smem>>
    %61 = vector.broadcast %60 : f32 to vector<8x16xf32>
    %62 = arith.addf %59, %61 : vector<8x16xf32>
    %c0_48 = arith.constant 0 : index
    %c1_49 = arith.constant 1 : index
    %63 = memref.load %arg4[%c0_48, %c1_49] : memref<8x4xf32, #tpu.memory_space<smem>>
    %64 = vector.broadcast %63 : f32 to vector<8x16xf32>
    %65 = arith.mulf %9, %64 : vector<8x16xf32>
    %66 = arith.addf %62, %65 : vector<8x16xf32>
    %c0_50 = arith.constant 0 : index
    %c2_51 = arith.constant 2 : index
    %67 = memref.load %arg4[%c0_50, %c2_51] : memref<8x4xf32, #tpu.memory_space<smem>>
    %68 = vector.broadcast %67 : f32 to vector<8x16xf32>
    %69 = arith.mulf %11, %68 : vector<8x16xf32>
    %70 = arith.addf %66, %69 : vector<8x16xf32>
    %c0_52 = arith.constant 0 : index
    %c3_53 = arith.constant 3 : index
    %71 = memref.load %arg4[%c0_52, %c3_53] : memref<8x4xf32, #tpu.memory_space<smem>>
    %72 = vector.broadcast %71 : f32 to vector<8x16xf32>
    %73 = arith.mulf %13, %72 : vector<8x16xf32>
    %74 = arith.addf %70, %73 : vector<8x16xf32>
    %c0_54 = arith.constant 0 : index
    %c0_55 = arith.constant 0 : index
    %c0_56 = arith.constant 0 : index
    %c0_57 = arith.constant 0 : index
    %75 = vector.load %arg10[%c0_54, %c0_55, %c0_56, %c0_57] : memref<1x8x8x16xf32, #tpu.memory_space<vmem>>, vector<1x1x8x16xf32>
    %76 = vector.shape_cast %75 : vector<1x1x8x16xf32> to vector<8x16xf32>
    %77 = vector.shape_cast %74 : vector<8x16xf32> to vector<1x1x8x16xf32>
    tpu.vector_store %arg10[%c0_54, %c0_55, %c0_56, %c0_57], %77 {strides = array<i32>} : memref<1x8x8x16xf32, #tpu.memory_space<vmem>>, vector<1x1x8x16xf32>,
    %c0_58 = arith.constant 0 : index
    %c0_59 = arith.constant 0 : index
    %c0_60 = arith.constant 0 : index
    %c0_61 = arith.constant 0 : index
    %78 = vector.load %arg7[%c0_58, %c0_59, %c0_60, %c0_61] : memref<1x8x8x16xf32, #tpu.memory_space<vmem>>, vector<1x1x8x16xf32>
    %79 = vector.shape_cast %78 : vector<1x1x8x16xf32> to vector<8x16xf32>
    %80 = arith.subf %74, %79 : vector<8x16xf32>
    %81 = arith.mulf %80, %5 : vector<8x16xf32>
    %82 = math.absf %81 : vector<8x16xf32>
    %cst_62 = arith.constant 1.000000e+00 : f32
    %83 = vector.broadcast %cst_62 : f32 to vector<8x16xf32>
    %84 = arith.minimumf %82, %83 : vector<8x16xf32>
    %cst_63 = arith.constant 5.000000e-01 : f32
    %85 = vector.broadcast %cst_63 : f32 to vector<8x16xf32>
    %86 = arith.mulf %85, %84 : vector<8x16xf32>
    %87 = arith.subf %82, %86 : vector<8x16xf32>
    %88 = arith.mulf %84, %87 : vector<8x16xf32>
    %89 = arith.addf %56, %88 : vector<8x16xf32>
    %c1_64 = arith.constant 1 : index
    %c0_65 = arith.constant 0 : index
    %90 = memref.load %arg4[%c1_64, %c0_65] : memref<8x4xf32, #tpu.memory_space<smem>>
    %91 = vector.broadcast %90 : f32 to vector<8x16xf32>
    %92 = arith.mulf %7, %91 : vector<8x16xf32>
    %c1_66 = arith.constant 1 : index
    %c0_67 = arith.constant 0 : index
    %93 = memref.load %arg5[%c1_66, %c0_67] : memref<8x1xf32, #tpu.memory_space<smem>>
    %94 = vector.broadcast %93 : f32 to vector<8x16xf32>
    %95 = arith.addf %92, %94 : vector<8x16xf32>
    %c1_68 = arith.constant 1 : index
    %c1_69 = arith.constant 1 : index
    %96 = memref.load %arg4[%c1_68, %c1_69] : memref<8x4xf32, #tpu.memory_space<smem>>
    %97 = vector.broadcast %96 : f32 to vector<8x16xf32>
    %98 = arith.mulf %9, %97 : vector<8x16xf32>
    %99 = arith.addf %95, %98 : vector<8x16xf32>
    %c1_70 = arith.constant 1 : index
    %c2_71 = arith.constant 2 : index
    %100 = memref.load %arg4[%c1_70, %c2_71] : memref<8x4xf32, #tpu.memory_space<smem>>
    %101 = vector.broadcast %100 : f32 to vector<8x16xf32>
    %102 = arith.mulf %11, %101 : vector<8x16xf32>
    %103 = arith.addf %99, %102 : vector<8x16xf32>
    %c1_72 = arith.constant 1 : index
    %c3_73 = arith.constant 3 : index
    %104 = memref.load %arg4[%c1_72, %c3_73] : memref<8x4xf32, #tpu.memory_space<smem>>
    %105 = vector.broadcast %104 : f32 to vector<8x16xf32>
    %106 = arith.mulf %13, %105 : vector<8x16xf32>
    %107 = arith.addf %103, %106 : vector<8x16xf32>
    %c0_74 = arith.constant 0 : index
    %c1_75 = arith.constant 1 : index
    %c0_76 = arith.constant 0 : index
    %c0_77 = arith.constant 0 : index
    %108 = vector.load %arg10[%c0_74, %c1_75, %c0_76, %c0_77] : memref<1x8x8x16xf32, #tpu.memory_space<vmem>>, vector<1x1x8x16xf32>
    %109 = vector.shape_cast %108 : vector<1x1x8x16xf32> to vector<8x16xf32>
    %110 = vector.shape_cast %107 : vector<8x16xf32> to vector<1x1x8x16xf32>
    tpu.vector_store %arg10[%c0_74, %c1_75, %c0_76, %c0_77], %110 {strides = array<i32>} : memref<1x8x8x16xf32, #tpu.memory_space<vmem>>, vector<1x1x8x16xf32>,
    %c0_78 = arith.constant 0 : index
    %c1_79 = arith.constant 1 : index
    %c0_80 = arith.constant 0 : index
    %c0_81 = arith.constant 0 : index
    %111 = vector.load %arg7[%c0_78, %c1_79, %c0_80, %c0_81] : memref<1x8x8x16xf32, #tpu.memory_space<vmem>>, vector<1x1x8x16xf32>
    %112 = vector.shape_cast %111 : vector<1x1x8x16xf32> to vector<8x16xf32>
    %113 = arith.subf %107, %112 : vector<8x16xf32>
    %114 = arith.mulf %113, %5 : vector<8x16xf32>
    %115 = math.absf %114 : vector<8x16xf32>
    %cst_82 = arith.constant 1.000000e+00 : f32
    %116 = vector.broadcast %cst_82 : f32 to vector<8x16xf32>
    %117 = arith.minimumf %115, %116 : vector<8x16xf32>
    %cst_83 = arith.constant 5.000000e-01 : f32
    %118 = vector.broadcast %cst_83 : f32 to vector<8x16xf32>
    %119 = arith.mulf %118, %117 : vector<8x16xf32>
    %120 = arith.subf %115, %119 : vector<8x16xf32>
    %121 = arith.mulf %117, %120 : vector<8x16xf32>
    %122 = arith.addf %89, %121 : vector<8x16xf32>
    %c2_84 = arith.constant 2 : index
    %c0_85 = arith.constant 0 : index
    %123 = memref.load %arg4[%c2_84, %c0_85] : memref<8x4xf32, #tpu.memory_space<smem>>
    %124 = vector.broadcast %123 : f32 to vector<8x16xf32>
    %125 = arith.mulf %7, %124 : vector<8x16xf32>
    %c2_86 = arith.constant 2 : index
    %c0_87 = arith.constant 0 : index
    %126 = memref.load %arg5[%c2_86, %c0_87] : memref<8x1xf32, #tpu.memory_space<smem>>
    %127 = vector.broadcast %126 : f32 to vector<8x16xf32>
    %128 = arith.addf %125, %127 : vector<8x16xf32>
    %c2_88 = arith.constant 2 : index
    %c1_89 = arith.constant 1 : index
    %129 = memref.load %arg4[%c2_88, %c1_89] : memref<8x4xf32, #tpu.memory_space<smem>>
    %130 = vector.broadcast %129 : f32 to vector<8x16xf32>
    %131 = arith.mulf %9, %130 : vector<8x16xf32>
    %132 = arith.addf %128, %131 : vector<8x16xf32>
    %c2_90 = arith.constant 2 : index
    %c2_91 = arith.constant 2 : index
    %133 = memref.load %arg4[%c2_90, %c2_91] : memref<8x4xf32, #tpu.memory_space<smem>>
    %134 = vector.broadcast %133 : f32 to vector<8x16xf32>
    %135 = arith.mulf %11, %134 : vector<8x16xf32>
    %136 = arith.addf %132, %135 : vector<8x16xf32>
    %c2_92 = arith.constant 2 : index
    %c3_93 = arith.constant 3 : index
    %137 = memref.load %arg4[%c2_92, %c3_93] : memref<8x4xf32, #tpu.memory_space<smem>>
    %138 = vector.broadcast %137 : f32 to vector<8x16xf32>
    %139 = arith.mulf %13, %138 : vector<8x16xf32>
    %140 = arith.addf %136, %139 : vector<8x16xf32>
    %c0_94 = arith.constant 0 : index
    %c2_95 = arith.constant 2 : index
    %c0_96 = arith.constant 0 : index
    %c0_97 = arith.constant 0 : index
    %141 = vector.load %arg10[%c0_94, %c2_95, %c0_96, %c0_97] : memref<1x8x8x16xf32, #tpu.memory_space<vmem>>, vector<1x1x8x16xf32>
    %142 = vector.shape_cast %141 : vector<1x1x8x16xf32> to vector<8x16xf32>
    %143 = vector.shape_cast %140 : vector<8x16xf32> to vector<1x1x8x16xf32>
    tpu.vector_store %arg10[%c0_94, %c2_95, %c0_96, %c0_97], %143 {strides = array<i32>} : memref<1x8x8x16xf32, #tpu.memory_space<vmem>>, vector<1x1x8x16xf32>,
    %c0_98 = arith.constant 0 : index
    %c2_99 = arith.constant 2 : index
    %c0_100 = arith.constant 0 : index
    %c0_101 = arith.constant 0 : index
    %144 = vector.load %arg7[%c0_98, %c2_99, %c0_100, %c0_101] : memref<1x8x8x16xf32, #tpu.memory_space<vmem>>, vector<1x1x8x16xf32>
    %145 = vector.shape_cast %144 : vector<1x1x8x16xf32> to vector<8x16xf32>
    %146 = arith.subf %140, %145 : vector<8x16xf32>
    %147 = arith.mulf %146, %5 : vector<8x16xf32>
    %148 = math.absf %147 : vector<8x16xf32>
    %cst_102 = arith.constant 1.000000e+00 : f32
    %149 = vector.broadcast %cst_102 : f32 to vector<8x16xf32>
    %150 = arith.minimumf %148, %149 : vector<8x16xf32>
    %cst_103 = arith.constant 5.000000e-01 : f32
    %151 = vector.broadcast %cst_103 : f32 to vector<8x16xf32>
    %152 = arith.mulf %151, %150 : vector<8x16xf32>
    %153 = arith.subf %148, %152 : vector<8x16xf32>
    %154 = arith.mulf %150, %153 : vector<8x16xf32>
    %155 = arith.addf %122, %154 : vector<8x16xf32>
    %c3_104 = arith.constant 3 : index
    %c0_105 = arith.constant 0 : index
    %156 = memref.load %arg4[%c3_104, %c0_105] : memref<8x4xf32, #tpu.memory_space<smem>>
    %157 = vector.broadcast %156 : f32 to vector<8x16xf32>
    %158 = arith.mulf %7, %157 : vector<8x16xf32>
    %c3_106 = arith.constant 3 : index
    %c0_107 = arith.constant 0 : index
    %159 = memref.load %arg5[%c3_106, %c0_107] : memref<8x1xf32, #tpu.memory_space<smem>>
    %160 = vector.broadcast %159 : f32 to vector<8x16xf32>
    %161 = arith.addf %158, %160 : vector<8x16xf32>
    %c3_108 = arith.constant 3 : index
    %c1_109 = arith.constant 1 : index
    %162 = memref.load %arg4[%c3_108, %c1_109] : memref<8x4xf32, #tpu.memory_space<smem>>
    %163 = vector.broadcast %162 : f32 to vector<8x16xf32>
    %164 = arith.mulf %9, %163 : vector<8x16xf32>
    %165 = arith.addf %161, %164 : vector<8x16xf32>
    %c3_110 = arith.constant 3 : index
    %c2_111 = arith.constant 2 : index
    %166 = memref.load %arg4[%c3_110, %c2_111] : memref<8x4xf32, #tpu.memory_space<smem>>
    %167 = vector.broadcast %166 : f32 to vector<8x16xf32>
    %168 = arith.mulf %11, %167 : vector<8x16xf32>
    %169 = arith.addf %165, %168 : vector<8x16xf32>
    %c3_112 = arith.constant 3 : index
    %c3_113 = arith.constant 3 : index
    %170 = memref.load %arg4[%c3_112, %c3_113] : memref<8x4xf32, #tpu.memory_space<smem>>
    %171 = vector.broadcast %170 : f32 to vector<8x16xf32>
    %172 = arith.mulf %13, %171 : vector<8x16xf32>
    %173 = arith.addf %169, %172 : vector<8x16xf32>
    %c0_114 = arith.constant 0 : index
    %c3_115 = arith.constant 3 : index
    %c0_116 = arith.constant 0 : index
    %c0_117 = arith.constant 0 : index
    %174 = vector.load %arg10[%c0_114, %c3_115, %c0_116, %c0_117] : memref<1x8x8x16xf32, #tpu.memory_space<vmem>>, vector<1x1x8x16xf32>
    %175 = vector.shape_cast %174 : vector<1x1x8x16xf32> to vector<8x16xf32>
    %176 = vector.shape_cast %173 : vector<8x16xf32> to vector<1x1x8x16xf32>
    tpu.vector_store %arg10[%c0_114, %c3_115, %c0_116, %c0_117], %176 {strides = array<i32>} : memref<1x8x8x16xf32, #tpu.memory_space<vmem>>, vector<1x1x8x16xf32>,
    %c0_118 = arith.constant 0 : index
    %c3_119 = arith.constant 3 : index
    %c0_120 = arith.constant 0 : index
    %c0_121 = arith.constant 0 : index
    %177 = vector.load %arg7[%c0_118, %c3_119, %c0_120, %c0_121] : memref<1x8x8x16xf32, #tpu.memory_space<vmem>>, vector<1x1x8x16xf32>
    %178 = vector.shape_cast %177 : vector<1x1x8x16xf32> to vector<8x16xf32>
    %179 = arith.subf %173, %178 : vector<8x16xf32>
    %180 = arith.mulf %179, %5 : vector<8x16xf32>
    %181 = math.absf %180 : vector<8x16xf32>
    %cst_122 = arith.constant 1.000000e+00 : f32
    %182 = vector.broadcast %cst_122 : f32 to vector<8x16xf32>
    %183 = arith.minimumf %181, %182 : vector<8x16xf32>
    %cst_123 = arith.constant 5.000000e-01 : f32
    %184 = vector.broadcast %cst_123 : f32 to vector<8x16xf32>
    %185 = arith.mulf %184, %183 : vector<8x16xf32>
    %186 = arith.subf %181, %185 : vector<8x16xf32>
    %187 = arith.mulf %183, %186 : vector<8x16xf32>
    %188 = arith.addf %155, %187 : vector<8x16xf32>
    %c4 = arith.constant 4 : index
    %c0_124 = arith.constant 0 : index
    %189 = memref.load %arg4[%c4, %c0_124] : memref<8x4xf32, #tpu.memory_space<smem>>
    %190 = vector.broadcast %189 : f32 to vector<8x16xf32>
    %191 = arith.mulf %7, %190 : vector<8x16xf32>
    %c4_125 = arith.constant 4 : index
    %c0_126 = arith.constant 0 : index
    %192 = memref.load %arg5[%c4_125, %c0_126] : memref<8x1xf32, #tpu.memory_space<smem>>
    %193 = vector.broadcast %192 : f32 to vector<8x16xf32>
    %194 = arith.addf %191, %193 : vector<8x16xf32>
    %c4_127 = arith.constant 4 : index
    %c1_128 = arith.constant 1 : index
    %195 = memref.load %arg4[%c4_127, %c1_128] : memref<8x4xf32, #tpu.memory_space<smem>>
    %196 = vector.broadcast %195 : f32 to vector<8x16xf32>
    %197 = arith.mulf %9, %196 : vector<8x16xf32>
    %198 = arith.addf %194, %197 : vector<8x16xf32>
    %c4_129 = arith.constant 4 : index
    %c2_130 = arith.constant 2 : index
    %199 = memref.load %arg4[%c4_129, %c2_130] : memref<8x4xf32, #tpu.memory_space<smem>>
    %200 = vector.broadcast %199 : f32 to vector<8x16xf32>
    %201 = arith.mulf %11, %200 : vector<8x16xf32>
    %202 = arith.addf %198, %201 : vector<8x16xf32>
    %c4_131 = arith.constant 4 : index
    %c3_132 = arith.constant 3 : index
    %203 = memref.load %arg4[%c4_131, %c3_132] : memref<8x4xf32, #tpu.memory_space<smem>>
    %204 = vector.broadcast %203 : f32 to vector<8x16xf32>
    %205 = arith.mulf %13, %204 : vector<8x16xf32>
    %206 = arith.addf %202, %205 : vector<8x16xf32>
    %c0_133 = arith.constant 0 : index
    %c4_134 = arith.constant 4 : index
    %c0_135 = arith.constant 0 : index
    %c0_136 = arith.constant 0 : index
    %207 = vector.load %arg10[%c0_133, %c4_134, %c0_135, %c0_136] : memref<1x8x8x16xf32, #tpu.memory_space<vmem>>, vector<1x1x8x16xf32>
    %208 = vector.shape_cast %207 : vector<1x1x8x16xf32> to vector<8x16xf32>
    %209 = vector.shape_cast %206 : vector<8x16xf32> to vector<1x1x8x16xf32>
    tpu.vector_store %arg10[%c0_133, %c4_134, %c0_135, %c0_136], %209 {strides = array<i32>} : memref<1x8x8x16xf32, #tpu.memory_space<vmem>>, vector<1x1x8x16xf32>,
    %c0_137 = arith.constant 0 : index
    %c4_138 = arith.constant 4 : index
    %c0_139 = arith.constant 0 : index
    %c0_140 = arith.constant 0 : index
    %210 = vector.load %arg7[%c0_137, %c4_138, %c0_139, %c0_140] : memref<1x8x8x16xf32, #tpu.memory_space<vmem>>, vector<1x1x8x16xf32>
    %211 = vector.shape_cast %210 : vector<1x1x8x16xf32> to vector<8x16xf32>
    %212 = arith.subf %206, %211 : vector<8x16xf32>
    %213 = arith.mulf %212, %5 : vector<8x16xf32>
    %214 = math.absf %213 : vector<8x16xf32>
    %cst_141 = arith.constant 1.000000e+00 : f32
    %215 = vector.broadcast %cst_141 : f32 to vector<8x16xf32>
    %216 = arith.minimumf %214, %215 : vector<8x16xf32>
    %cst_142 = arith.constant 5.000000e-01 : f32
    %217 = vector.broadcast %cst_142 : f32 to vector<8x16xf32>
    %218 = arith.mulf %217, %216 : vector<8x16xf32>
    %219 = arith.subf %214, %218 : vector<8x16xf32>
    %220 = arith.mulf %216, %219 : vector<8x16xf32>
    %221 = arith.addf %188, %220 : vector<8x16xf32>
    %c5 = arith.constant 5 : index
    %c0_143 = arith.constant 0 : index
    %222 = memref.load %arg4[%c5, %c0_143] : memref<8x4xf32, #tpu.memory_space<smem>>
    %223 = vector.broadcast %222 : f32 to vector<8x16xf32>
    %224 = arith.mulf %7, %223 : vector<8x16xf32>
    %c5_144 = arith.constant 5 : index
    %c0_145 = arith.constant 0 : index
    %225 = memref.load %arg5[%c5_144, %c0_145] : memref<8x1xf32, #tpu.memory_space<smem>>
    %226 = vector.broadcast %225 : f32 to vector<8x16xf32>
    %227 = arith.addf %224, %226 : vector<8x16xf32>
    %c5_146 = arith.constant 5 : index
    %c1_147 = arith.constant 1 : index
    %228 = memref.load %arg4[%c5_146, %c1_147] : memref<8x4xf32, #tpu.memory_space<smem>>
    %229 = vector.broadcast %228 : f32 to vector<8x16xf32>
    %230 = arith.mulf %9, %229 : vector<8x16xf32>
    %231 = arith.addf %227, %230 : vector<8x16xf32>
    %c5_148 = arith.constant 5 : index
    %c2_149 = arith.constant 2 : index
    %232 = memref.load %arg4[%c5_148, %c2_149] : memref<8x4xf32, #tpu.memory_space<smem>>
    %233 = vector.broadcast %232 : f32 to vector<8x16xf32>
    %234 = arith.mulf %11, %233 : vector<8x16xf32>
    %235 = arith.addf %231, %234 : vector<8x16xf32>
    %c5_150 = arith.constant 5 : index
    %c3_151 = arith.constant 3 : index
    %236 = memref.load %arg4[%c5_150, %c3_151] : memref<8x4xf32, #tpu.memory_space<smem>>
    %237 = vector.broadcast %236 : f32 to vector<8x16xf32>
    %238 = arith.mulf %13, %237 : vector<8x16xf32>
    %239 = arith.addf %235, %238 : vector<8x16xf32>
    %c0_152 = arith.constant 0 : index
    %c5_153 = arith.constant 5 : index
    %c0_154 = arith.constant 0 : index
    %c0_155 = arith.constant 0 : index
    %240 = vector.load %arg10[%c0_152, %c5_153, %c0_154, %c0_155] : memref<1x8x8x16xf32, #tpu.memory_space<vmem>>, vector<1x1x8x16xf32>
    %241 = vector.shape_cast %240 : vector<1x1x8x16xf32> to vector<8x16xf32>
    %242 = vector.shape_cast %239 : vector<8x16xf32> to vector<1x1x8x16xf32>
    tpu.vector_store %arg10[%c0_152, %c5_153, %c0_154, %c0_155], %242 {strides = array<i32>} : memref<1x8x8x16xf32, #tpu.memory_space<vmem>>, vector<1x1x8x16xf32>,
    %c0_156 = arith.constant 0 : index
    %c5_157 = arith.constant 5 : index
    %c0_158 = arith.constant 0 : index
    %c0_159 = arith.constant 0 : index
    %243 = vector.load %arg7[%c0_156, %c5_157, %c0_158, %c0_159] : memref<1x8x8x16xf32, #tpu.memory_space<vmem>>, vector<1x1x8x16xf32>
    %244 = vector.shape_cast %243 : vector<1x1x8x16xf32> to vector<8x16xf32>
    %245 = arith.subf %239, %244 : vector<8x16xf32>
    %246 = arith.mulf %245, %5 : vector<8x16xf32>
    %247 = math.absf %246 : vector<8x16xf32>
    %cst_160 = arith.constant 1.000000e+00 : f32
    %248 = vector.broadcast %cst_160 : f32 to vector<8x16xf32>
    %249 = arith.minimumf %247, %248 : vector<8x16xf32>
    %cst_161 = arith.constant 5.000000e-01 : f32
    %250 = vector.broadcast %cst_161 : f32 to vector<8x16xf32>
    %251 = arith.mulf %250, %249 : vector<8x16xf32>
    %252 = arith.subf %247, %251 : vector<8x16xf32>
    %253 = arith.mulf %249, %252 : vector<8x16xf32>
    %254 = arith.addf %221, %253 : vector<8x16xf32>
    %c6 = arith.constant 6 : index
    %c0_162 = arith.constant 0 : index
    %255 = memref.load %arg4[%c6, %c0_162] : memref<8x4xf32, #tpu.memory_space<smem>>
    %256 = vector.broadcast %255 : f32 to vector<8x16xf32>
    %257 = arith.mulf %7, %256 : vector<8x16xf32>
    %c6_163 = arith.constant 6 : index
    %c0_164 = arith.constant 0 : index
    %258 = memref.load %arg5[%c6_163, %c0_164] : memref<8x1xf32, #tpu.memory_space<smem>>
    %259 = vector.broadcast %258 : f32 to vector<8x16xf32>
    %260 = arith.addf %257, %259 : vector<8x16xf32>
    %c6_165 = arith.constant 6 : index
    %c1_166 = arith.constant 1 : index
    %261 = memref.load %arg4[%c6_165, %c1_166] : memref<8x4xf32, #tpu.memory_space<smem>>
    %262 = vector.broadcast %261 : f32 to vector<8x16xf32>
    %263 = arith.mulf %9, %262 : vector<8x16xf32>
    %264 = arith.addf %260, %263 : vector<8x16xf32>
    %c6_167 = arith.constant 6 : index
    %c2_168 = arith.constant 2 : index
    %265 = memref.load %arg4[%c6_167, %c2_168] : memref<8x4xf32, #tpu.memory_space<smem>>
    %266 = vector.broadcast %265 : f32 to vector<8x16xf32>
    %267 = arith.mulf %11, %266 : vector<8x16xf32>
    %268 = arith.addf %264, %267 : vector<8x16xf32>
    %c6_169 = arith.constant 6 : index
    %c3_170 = arith.constant 3 : index
    %269 = memref.load %arg4[%c6_169, %c3_170] : memref<8x4xf32, #tpu.memory_space<smem>>
    %270 = vector.broadcast %269 : f32 to vector<8x16xf32>
    %271 = arith.mulf %13, %270 : vector<8x16xf32>
    %272 = arith.addf %268, %271 : vector<8x16xf32>
    %c0_171 = arith.constant 0 : index
    %c6_172 = arith.constant 6 : index
    %c0_173 = arith.constant 0 : index
    %c0_174 = arith.constant 0 : index
    %273 = vector.load %arg10[%c0_171, %c6_172, %c0_173, %c0_174] : memref<1x8x8x16xf32, #tpu.memory_space<vmem>>, vector<1x1x8x16xf32>
    %274 = vector.shape_cast %273 : vector<1x1x8x16xf32> to vector<8x16xf32>
    %275 = vector.shape_cast %272 : vector<8x16xf32> to vector<1x1x8x16xf32>
    tpu.vector_store %arg10[%c0_171, %c6_172, %c0_173, %c0_174], %275 {strides = array<i32>} : memref<1x8x8x16xf32, #tpu.memory_space<vmem>>, vector<1x1x8x16xf32>,
    %c0_175 = arith.constant 0 : index
    %c6_176 = arith.constant 6 : index
    %c0_177 = arith.constant 0 : index
    %c0_178 = arith.constant 0 : index
    %276 = vector.load %arg7[%c0_175, %c6_176, %c0_177, %c0_178] : memref<1x8x8x16xf32, #tpu.memory_space<vmem>>, vector<1x1x8x16xf32>
    %277 = vector.shape_cast %276 : vector<1x1x8x16xf32> to vector<8x16xf32>
    %278 = arith.subf %272, %277 : vector<8x16xf32>
    %279 = arith.mulf %278, %5 : vector<8x16xf32>
    %280 = math.absf %279 : vector<8x16xf32>
    %cst_179 = arith.constant 1.000000e+00 : f32
    %281 = vector.broadcast %cst_179 : f32 to vector<8x16xf32>
    %282 = arith.minimumf %280, %281 : vector<8x16xf32>
    %cst_180 = arith.constant 5.000000e-01 : f32
    %283 = vector.broadcast %cst_180 : f32 to vector<8x16xf32>
    %284 = arith.mulf %283, %282 : vector<8x16xf32>
    %285 = arith.subf %280, %284 : vector<8x16xf32>
    %286 = arith.mulf %282, %285 : vector<8x16xf32>
    %287 = arith.addf %254, %286 : vector<8x16xf32>
    %c7 = arith.constant 7 : index
    %c0_181 = arith.constant 0 : index
    %288 = memref.load %arg4[%c7, %c0_181] : memref<8x4xf32, #tpu.memory_space<smem>>
    %289 = vector.broadcast %288 : f32 to vector<8x16xf32>
    %290 = arith.mulf %7, %289 : vector<8x16xf32>
    %c7_182 = arith.constant 7 : index
    %c0_183 = arith.constant 0 : index
    %291 = memref.load %arg5[%c7_182, %c0_183] : memref<8x1xf32, #tpu.memory_space<smem>>
    %292 = vector.broadcast %291 : f32 to vector<8x16xf32>
    %293 = arith.addf %290, %292 : vector<8x16xf32>
    %c7_184 = arith.constant 7 : index
    %c1_185 = arith.constant 1 : index
    %294 = memref.load %arg4[%c7_184, %c1_185] : memref<8x4xf32, #tpu.memory_space<smem>>
    %295 = vector.broadcast %294 : f32 to vector<8x16xf32>
    %296 = arith.mulf %9, %295 : vector<8x16xf32>
    %297 = arith.addf %293, %296 : vector<8x16xf32>
    %c7_186 = arith.constant 7 : index
    %c2_187 = arith.constant 2 : index
    %298 = memref.load %arg4[%c7_186, %c2_187] : memref<8x4xf32, #tpu.memory_space<smem>>
    %299 = vector.broadcast %298 : f32 to vector<8x16xf32>
    %300 = arith.mulf %11, %299 : vector<8x16xf32>
    %301 = arith.addf %297, %300 : vector<8x16xf32>
    %c7_188 = arith.constant 7 : index
    %c3_189 = arith.constant 3 : index
    %302 = memref.load %arg4[%c7_188, %c3_189] : memref<8x4xf32, #tpu.memory_space<smem>>
    %303 = vector.broadcast %302 : f32 to vector<8x16xf32>
    %304 = arith.mulf %13, %303 : vector<8x16xf32>
    %305 = arith.addf %301, %304 : vector<8x16xf32>
    %c0_190 = arith.constant 0 : index
    %c7_191 = arith.constant 7 : index
    %c0_192 = arith.constant 0 : index
    %c0_193 = arith.constant 0 : index
    %306 = vector.load %arg10[%c0_190, %c7_191, %c0_192, %c0_193] : memref<1x8x8x16xf32, #tpu.memory_space<vmem>>, vector<1x1x8x16xf32>
    %307 = vector.shape_cast %306 : vector<1x1x8x16xf32> to vector<8x16xf32>
    %308 = vector.shape_cast %305 : vector<8x16xf32> to vector<1x1x8x16xf32>
    tpu.vector_store %arg10[%c0_190, %c7_191, %c0_192, %c0_193], %308 {strides = array<i32>} : memref<1x8x8x16xf32, #tpu.memory_space<vmem>>, vector<1x1x8x16xf32>,
    %c0_194 = arith.constant 0 : index
    %c7_195 = arith.constant 7 : index
    %c0_196 = arith.constant 0 : index
    %c0_197 = arith.constant 0 : index
    %309 = vector.load %arg7[%c0_194, %c7_195, %c0_196, %c0_197] : memref<1x8x8x16xf32, #tpu.memory_space<vmem>>, vector<1x1x8x16xf32>
    %310 = vector.shape_cast %309 : vector<1x1x8x16xf32> to vector<8x16xf32>
    %311 = arith.subf %305, %310 : vector<8x16xf32>
    %312 = arith.mulf %311, %5 : vector<8x16xf32>
    %313 = math.absf %312 : vector<8x16xf32>
    %cst_198 = arith.constant 1.000000e+00 : f32
    %314 = vector.broadcast %cst_198 : f32 to vector<8x16xf32>
    %315 = arith.minimumf %313, %314 : vector<8x16xf32>
    %cst_199 = arith.constant 5.000000e-01 : f32
    %316 = vector.broadcast %cst_199 : f32 to vector<8x16xf32>
    %317 = arith.mulf %316, %315 : vector<8x16xf32>
    %318 = arith.subf %313, %317 : vector<8x16xf32>
    %319 = arith.mulf %315, %318 : vector<8x16xf32>
    %320 = arith.addf %287, %319 : vector<8x16xf32>
    %cst_200 = arith.constant 0.000000e+00 : f32
    %321 = vector.broadcast %cst_200 : f32 to vector<8x16xf32>
    %322 = arith.cmpf one, %5, %321 : vector<8x16xf32>
    %323 = arith.subf %31, %49 : vector<8x16xf32>
    %324 = arith.subf %49, %31 : vector<8x16xf32>
    %325 = arith.select %322, %323, %324 : vector<8x16xi1>, vector<8x16xf32>
    %cst_201 = arith.constant 0.000000e+00 : f32
    %326 = vector.broadcast %cst_201 : f32 to vector<8x16xf32>
    %327 = arith.maximumf %325, %326 : vector<8x16xf32>
    %328 = math.absf %325 : vector<8x16xf32>
    %cst_202 = arith.constant 0.000000e+00 : f32
    %329 = vector.broadcast %cst_202 : f32 to vector<8x16xf32>
    %330 = arith.subf %329, %328 : vector<8x16xf32>
    %331 = math.exp %330 : vector<8x16xf32>
    %cst_203 = arith.constant 1.000000e+00 : f32
    %332 = vector.broadcast %cst_203 : f32 to vector<8x16xf32>
    %333 = arith.addf %332, %331 : vector<8x16xf32>
    %334 = math.log %333 : vector<8x16xf32>
    %335 = arith.addf %327, %334 : vector<8x16xf32>
    %c0_204 = arith.constant 0 : index
    %c0_205 = arith.constant 0 : index
    %c0_206 = arith.constant 0 : index
    %336 = vector.load %arg11[%c0_204, %c0_205, %c0_206] : memref<1x1x1xf32, #tpu.memory_space<vmem>>, vector<1x1x1xf32>
    %337 = vector.shape_cast %336 : vector<1x1x1xf32> to vector<1x1xf32>
    %338 = vector.shape_cast %320 : vector<8x16xf32> to vector<1x8x16xf32>
    %cst_207 = arith.constant dense<0.000000e+00> : vector<1xf32>
    %339 = vector.multi_reduction <add>, %338, %cst_207 [1, 2] : vector<1x8x16xf32> to vector<1xf32>
    %340 = vector.shape_cast %339 : vector<1xf32> to vector<1x1x1xf32>
    %341 = vector.extract %340[0, 0, 0] : f32 from vector<1x1x1xf32>
    %342 = vector.broadcast %341 : f32 to vector<1x1xf32>
    %343 = arith.addf %337, %342 : vector<1x1xf32>
    %c0_208 = arith.constant 0 : index
    %c0_209 = arith.constant 0 : index
    %c0_210 = arith.constant 0 : index
    %344 = vector.load %arg11[%c0_208, %c0_209, %c0_210] : memref<1x1x1xf32, #tpu.memory_space<vmem>>, vector<1x1x1xf32>
    %345 = vector.shape_cast %344 : vector<1x1x1xf32> to vector<1x1xf32>
    %346 = vector.shape_cast %343 : vector<1x1xf32> to vector<1x1x1xf32>
    tpu.vector_store %arg11[%c0_208, %c0_209, %c0_210], %346 {strides = array<i32>} : memref<1x1x1xf32, #tpu.memory_space<vmem>>, vector<1x1x1xf32>,
    %c0_211 = arith.constant 0 : index
    %c0_212 = arith.constant 0 : index
    %c0_213 = arith.constant 0 : index
    %347 = vector.load %arg12[%c0_211, %c0_212, %c0_213] : memref<1x1x1xf32, #tpu.memory_space<vmem>>, vector<1x1x1xf32>
    %348 = vector.shape_cast %347 : vector<1x1x1xf32> to vector<1x1xf32>
    %349 = vector.shape_cast %5 : vector<8x16xf32> to vector<1x8x16xf32>
    %cst_214 = arith.constant dense<0.000000e+00> : vector<1xf32>
    %350 = vector.multi_reduction <add>, %349, %cst_214 [1, 2] : vector<1x8x16xf32> to vector<1xf32>
    %351 = vector.shape_cast %350 : vector<1xf32> to vector<1x1x1xf32>
    %352 = vector.extract %351[0, 0, 0] : f32 from vector<1x1x1xf32>
    %353 = vector.broadcast %352 : f32 to vector<1x1xf32>
    %354 = arith.addf %348, %353 : vector<1x1xf32>
    %c0_215 = arith.constant 0 : index
    %c0_216 = arith.constant 0 : index
    %c0_217 = arith.constant 0 : index
    %355 = vector.load %arg12[%c0_215, %c0_216, %c0_217] : memref<1x1x1xf32, #tpu.memory_space<vmem>>, vector<1x1x1xf32>
    %356 = vector.shape_cast %355 : vector<1x1x1xf32> to vector<1x1xf32>
    %357 = vector.shape_cast %354 : vector<1x1xf32> to vector<1x1x1xf32>
    tpu.vector_store %arg12[%c0_215, %c0_216, %c0_217], %357 {strides = array<i32>} : memref<1x1x1xf32, #tpu.memory_space<vmem>>, vector<1x1x1xf32>,
    %c0_218 = arith.constant 0 : index
    %c0_219 = arith.constant 0 : index
    %c0_220 = arith.constant 0 : index
    %358 = vector.load %arg13[%c0_218, %c0_219, %c0_220] : memref<1x1x1xf32, #tpu.memory_space<vmem>>, vector<1x1x1xf32>
    %359 = vector.shape_cast %358 : vector<1x1x1xf32> to vector<1x1xf32>
    %360 = vector.shape_cast %335 : vector<8x16xf32> to vector<1x8x16xf32>
    %cst_221 = arith.constant dense<0.000000e+00> : vector<1xf32>
    %361 = vector.multi_reduction <add>, %360, %cst_221 [1, 2] : vector<1x8x16xf32> to vector<1xf32>
    %362 = vector.shape_cast %361 : vector<1xf32> to vector<1x1x1xf32>
    %363 = vector.extract %362[0, 0, 0] : f32 from vector<1x1x1xf32>
    %364 = vector.broadcast %363 : f32 to vector<1x1xf32>
    %365 = arith.addf %359, %364 : vector<1x1xf32>
    %c0_222 = arith.constant 0 : index
    %c0_223 = arith.constant 0 : index
    %c0_224 = arith.constant 0 : index
    %366 = vector.load %arg13[%c0_222, %c0_223, %c0_224] : memref<1x1x1xf32, #tpu.memory_space<vmem>>, vector<1x1x1xf32>
    %367 = vector.shape_cast %366 : vector<1x1x1xf32> to vector<1x1xf32>
    %368 = vector.shape_cast %365 : vector<1x1xf32> to vector<1x1x1xf32>
    tpu.vector_store %arg13[%c0_222, %c0_223, %c0_224], %368 {strides = array<i32>} : memref<1x1x1xf32, #tpu.memory_space<vmem>>, vector<1x1x1xf32>,
    return
  }
  func.func @transform_0(%arg0: i32, %arg1: i32) -> (i32, i32) {
    %c0_i32 = arith.constant 0 : i32
    %c0_i32_0 = arith.constant 0 : i32
    %c0_i32_1 = arith.constant 0 : i32
    return %c0_i32, %c0_i32_0 : i32, i32
  }
  func.func @transform_1(%arg0: i32, %arg1: i32) -> (i32, i32) {
    %c0_i32 = arith.constant 0 : i32
    %c0_i32_0 = arith.constant 0 : i32
    %c0_i32_1 = arith.constant 0 : i32
    return %c0_i32, %c0_i32_0 : i32, i32
  }
  func.func @transform_2(%arg0: i32, %arg1: i32) -> (i32, i32) {
    %c0_i32 = arith.constant 0 : i32
    %c0_i32_0 = arith.constant 0 : i32
    %c0_i32_1 = arith.constant 0 : i32
    return %c0_i32, %c0_i32_0 : i32, i32
  }
  func.func @transform_3(%arg0: i32, %arg1: i32) -> (i32, i32) {
    %c0_i32 = arith.constant 0 : i32
    %c0_i32_0 = arith.constant 0 : i32
    %c0_i32_1 = arith.constant 0 : i32
    return %c0_i32, %c0_i32_0 : i32, i32
  }
  func.func @transform_4(%arg0: i32, %arg1: i32) -> (i32, i32, i32, i32) {
    %c0_i32 = arith.constant 0 : i32
    %c0_i32_0 = arith.constant 0 : i32
    %c0_i32_1 = arith.constant 0 : i32
    return %arg0, %c0_i32, %arg1, %c0_i32_0 : i32, i32, i32, i32
  }
  func.func @transform_5(%arg0: i32, %arg1: i32) -> (i32, i32, i32, i32) {
    %c0_i32 = arith.constant 0 : i32
    %c0_i32_0 = arith.constant 0 : i32
    %c0_i32_1 = arith.constant 0 : i32
    return %arg0, %c0_i32, %arg1, %c0_i32_0 : i32, i32, i32, i32
  }
  func.func @transform_6(%arg0: i32, %arg1: i32) -> (i32, i32, i32) {
    %c0_i32 = arith.constant 0 : i32
    %c0_i32_0 = arith.constant 0 : i32
    return %arg0, %arg1, %c0_i32 : i32, i32, i32
  }
  func.func @transform_7(%arg0: i32, %arg1: i32) -> (i32, i32, i32, i32) {
    %c0_i32 = arith.constant 0 : i32
    %c0_i32_0 = arith.constant 0 : i32
    %c0_i32_1 = arith.constant 0 : i32
    return %arg0, %c0_i32, %arg1, %c0_i32_0 : i32, i32, i32, i32
  }
  func.func @transform_8(%arg0: i32, %arg1: i32) -> (i32, i32, i32, i32) {
    %c0_i32 = arith.constant 0 : i32
    %c0_i32_0 = arith.constant 0 : i32
    %c0_i32_1 = arith.constant 0 : i32
    return %arg0, %c0_i32, %arg1, %c0_i32_0 : i32, i32, i32, i32
  }
  func.func @transform_9(%arg0: i32, %arg1: i32) -> (i32, i32, i32) {
    %c0_i32 = arith.constant 0 : i32
    %c0_i32_0 = arith.constant 0 : i32
    %c0_i32_1 = arith.constant 0 : i32
    return %arg0, %c0_i32, %c0_i32_0 : i32, i32, i32
  }
  func.func @transform_10(%arg0: i32, %arg1: i32) -> (i32, i32, i32) {
    %c0_i32 = arith.constant 0 : i32
    %c0_i32_0 = arith.constant 0 : i32
    %c0_i32_1 = arith.constant 0 : i32
    return %arg0, %c0_i32, %c0_i32_0 : i32, i32, i32
  }
  func.func @transform_11(%arg0: i32, %arg1: i32) -> (i32, i32, i32) {
    %c0_i32 = arith.constant 0 : i32
    %c0_i32_0 = arith.constant 0 : i32
    %c0_i32_1 = arith.constant 0 : i32
    return %arg0, %c0_i32, %c0_i32_0 : i32, i32, i32
  }
}

</mosaic_0001>

<llo_original>
// kernel: tpu_custom_call.1
$region0: #{tpu_custom_call.1}
  #allocation0 [shape = 'u32[]', space=smem, size = 0x4, offset = 0x4, fixed_abs, tag = 'smem constant byte address 0x4 - core index']
  #allocation1 [shape = 'u32[72,128]{1,0:T(1,128)}', space=vmem, size = 0x9000, scoped, tag = 'internal scratch']
  %s0 = inlined_call_operand.vmem [shape: f32[2,4], index: 0, kind: input, shape index: {}]
  %s1 = inlined_call_operand.vmem [shape: f32[2,1], index: 1, kind: input, shape index: {}]
  %s2 = inlined_call_operand.vmem [shape: f32[8,4], index: 2, kind: input, shape index: {}]
  %s3 = inlined_call_operand.vmem [shape: f32[8,1], index: 3, kind: input, shape index: {}]
  %s4 = inlined_call_operand.hbm [shape: f32[2,4,16,16], index: 4, kind: input, shape index: {}]
  %s5 = inlined_call_operand.hbm [shape: f32[2,8,16,16], index: 5, kind: input, shape index: {}]
  %s6 = inlined_call_operand.hbm [shape: s32[2,16,16], index: 6, kind: input, shape index: {}]
  %s7 = inlined_call_operand.hbm [shape: f32[2,2,16,16], index: 7, kind: output, shape index: {0}]
  %s8 = inlined_call_operand.hbm [shape: f32[2,8,16,16], index: 8, kind: output, shape index: {1}]
  %s9 = inlined_call_operand.vmem [shape: f32[2,1,1], index: 9, kind: output, shape index: {2}]
  %s10 = inlined_call_operand.vmem [shape: f32[2,1,1], index: 10, kind: output, shape index: {3}]
  %s11 = inlined_call_operand.vmem [shape: f32[2,1,1], index: 11, kind: output, shape index: {4}]
  %12 = xla_tuple %s7, %s8, %s9, %s10, %s11
  %s13 = sld [smem:[#allocation0]]
  $region125: #{tpu_custom_call.1} parent=0
    _
  %s15 = ssub.s32 1, %s13
  %s16 = scalar_select 0, %s15, %s13
  $region1: #{tpu_custom_call.1} parent=0
    #allocation2 [shape = 'u8[1024]{0}', space=smem, size = 0x400, scoped, tag = 'input window, operand 0, single buffered']
    #allocation3 [shape = 's32[2]{0}', space=sflag, size = 0x8, scoped, tag = 'scoped memory for tpu_custom_call.1']
    #allocation4 [shape = 's32[2]{0}', space=sflag, size = 0x8, scoped, tag = 'scoped memory for tpu_custom_call.1']
    #allocation5 [shape = 's32[2]{0}', space=sflag, size = 0x8, scoped, tag = 'scoped memory for tpu_custom_call.1']
    #allocation6 [shape = 'u8[1024]{0}', space=smem, size = 0x400, scoped, tag = 'input window, operand 1, single buffered']
    #allocation7 [shape = 's32[1]{0}', space=sflag, size = 0x4, scoped, tag = 'scoped memory for tpu_custom_call.1']
    #allocation8 [shape = 'u8[4096]{0}', space=smem, size = 0x1000, scoped, tag = 'input window, operand 2, single buffered']
    #allocation9 [shape = 'u8[4096]{0}', space=smem, size = 0x1000, scoped, tag = 'input window, operand 3, single buffered']
    #allocation10 [shape = 's32[1]{0}', space=sflag, size = 0x4, scoped, tag = 'scoped memory for tpu_custom_call.1']
    #allocation11 [shape = 'u8[32768]{0}', space=vmem, size = 0x8000, scoped, tag = 'input window, operand 4']
    #allocation12 [shape = 'u8[65536]{0}', space=vmem, size = 0x10000, scoped, tag = 'input window, operand 5']
    #allocation13 [shape = 's32[2]{0}', space=sflag, size = 0x8, scoped, tag = 'scoped memory for tpu_custom_call.1']
    #allocation14 [shape = 'u8[8192]{0}', space=vmem, size = 0x2000, scoped, tag = 'input window, operand 6']
    #allocation15 [shape = 'u8[16384]{0}', space=vmem, size = 0x4000, scoped, tag = 'output window, operand 0']
    #allocation16 [shape = 'u8[65536]{0}', space=vmem, size = 0x10000, scoped, tag = 'output window, operand 1']
    #allocation17 [shape = 's32[2]{0}', space=sflag, size = 0x8, scoped, tag = 'scoped memory for tpu_custom_call.1']
    %17 = vsyncpa [#allocation5], 0
    %18 = vsyncpa [#allocation7], 0
    %19 = vsyncpa [#allocation10], 0
    %20 = vsyncpa [#allocation3], 0
    %s21 = scalar_lea.sflag [#allocation3], 1
    %22 = vsyncpa %s21, 0
    %23 = vsyncpa [#allocation13], 0
    %s24 = scalar_lea.sflag [#allocation13], 1
    %25 = vsyncpa %s24, 0
    %26 = vsyncpa [#allocation4], 0
    %s27 = scalar_lea.sflag [#allocation4], 1
    %28 = vsyncpa %s27, 0
    %29 = vsyncpa [#allocation17], 0
    %s30 = scalar_lea.sflag [#allocation17], 1
    %31 = vsyncpa %s30, 0
    loop: start=0, step=1, limit=6
    $region2: #{tpu_custom_call.1} parent=1 // loop_pre_header
      _
    $region3: #{tpu_custom_call.1} parent=1 // loop_header
      %s33 = sphi 0, %s37
      %p34 = scmp.ge.s32.totalorder %s33, 6
      %s40 = sphi 0, %s52
      %s41 = sphi 0, %s48
      %s42 = sphi 0, %s40
      %s43 = sphi 0, %s41
      %s44 = sphi 0, %s42
      %s45 = sphi 0, %s43
      %s53 = sphi 0, %s53
      %s55 = sphi 0, %s53
      %s56 = sphi 0, %s55
      %s70 = sphi 0, %s56
      %s74 = sphi 0, %s74
      %s76 = sphi 0, %s74
      %s77 = sphi 0, %s76
      %s91 = sphi 0, %s77
      %s95 = sphi 0, %s95
      %s97 = sphi 0, %s95
      %s98 = sphi 0, %s97
      %s112 = sphi 0, %s98
      %s116 = sphi 0, %s116
      %s118 = sphi 0, %s116
      %s119 = sphi 0, %s118
      %s133 = sphi 0, %s119
      %s141 = sphi 0, %s143
      %s144 = sphi 0, %s141
      %s145 = sphi 0, %s144
      %s161 = sphi 0, %s145
      %s169 = sphi 0, %s171
      %s172 = sphi 0, %s169
      %s173 = sphi 0, %s172
      %s189 = sphi 0, %s173
      %s197 = sphi 0, %s199
      %s200 = sphi 0, %s197
      %s201 = sphi 0, %s200
      %s217 = sphi 0, %s201
      %s225 = sphi 0, %s227
      %s228 = sphi 0, %s225
      %s229 = sphi 0, %s228
      %s245 = sphi 0, %s229
      %s253 = sphi 0, %s255
      %s256 = sphi 0, %s253
      %s257 = sphi 0, %s256
      %s273 = sphi 0, %s257
      %s279 = sphi 0, %s281
      %s282 = sphi 0, %s279
      %s283 = sphi 0, %s282
      %s299 = sphi 0, %s283
      %s305 = sphi 0, %s307
      %s308 = sphi 0, %s305
      %s309 = sphi 0, %s308
      %s325 = sphi 0, %s309
      %s331 = sphi 0, %s333
      %s334 = sphi 0, %s331
      %s335 = sphi 0, %s334
      %s351 = sphi 0, %s335
    $region4: #{tpu_custom_call.1} parent=1 // loop_header_branch
      %36 = sbr.rel (%p34) target = $region8
    $region5: #{tpu_custom_call.1} parent=1 // loop_body
      %s38 = ssub.s32 %s33, 1
      %s39 = ssub.s32 %s33, 2
      %s46 = sadd.s32 1, %s41
      %p47 = scmp.ge.s32.totalorder %s46, 2
      %s48 = scalar_select %p47, 0, %s46
      %s49 = sadd.s32 1, %s40
      %s50 = scalar_select %p47, %s49, %s40
      %p51 = scmp.ge.s32.totalorder %s50, 2
      %s52 = scalar_select %p51, 0, %s50
      %s54 = sadd.s32 %s53, 1
      %p57 = scmp.eq.s32.totalorder %s33, 3
      %p58 = scmp.ne.s32.totalorder %s53, %s55
      %p59 = scmp.eq.s32.totalorder %s33, 0
      %p60 = por %p58, %p59
      %p61 = scmp.ne.s32.totalorder %s53, %s55
      %p62 = scmp.eq.s32.totalorder %s38, 3
      %p63 = por %p61, %p62
      %p64 = scmp.ne.s32.totalorder %s55, %s56
      %p65 = scmp.eq.s32.totalorder %s38, 0
      %p66 = por %p64, %p65
      %p67 = scmp.ne.s32.totalorder %s55, %s56
      %p68 = scmp.eq.s32.totalorder %s39, 3
      %p69 = por %p67, %p68
      %p71 = scmp.ne.s32.totalorder %s56, %s70
      %p72 = scmp.eq.s32.totalorder %s39, 0
      %p73 = por %p71, %p72
      %s75 = sadd.s32 %s74, 1
      %p78 = scmp.eq.s32.totalorder %s33, 3
      %p79 = scmp.ne.s32.totalorder %s74, %s76
      %p80 = scmp.eq.s32.totalorder %s33, 0
      %p81 = por %p79, %p80
      %p82 = scmp.ne.s32.totalorder %s74, %s76
      %p83 = scmp.eq.s32.totalorder %s38, 3
      %p84 = por %p82, %p83
      %p85 = scmp.ne.s32.totalorder %s76, %s77
      %p86 = scmp.eq.s32.totalorder %s38, 0
      %p87 = por %p85, %p86
      %p88 = scmp.ne.s32.totalorder %s76, %s77
      %p89 = scmp.eq.s32.totalorder %s39, 3
      %p90 = por %p88, %p89
      %p92 = scmp.ne.s32.totalorder %s77, %s91
      %p93 = scmp.eq.s32.totalorder %s39, 0
      %p94 = por %p92, %p93
      %s96 = sadd.s32 %s95, 1
      %p99 = scmp.eq.s32.totalorder %s33, 3
      %p100 = scmp.ne.s32.totalorder %s95, %s97
      %p101 = scmp.eq.s32.totalorder %s33, 0
      %p102 = por %p100, %p101
      %p103 = scmp.ne.s32.totalorder %s95, %s97
      %p104 = scmp.eq.s32.totalorder %s38, 3
      %p105 = por %p103, %p104
      %p106 = scmp.ne.s32.totalorder %s97, %s98
      %p107 = scmp.eq.s32.totalorder %s38, 0
      %p108 = por %p106, %p107
      %p109 = scmp.ne.s32.totalorder %s97, %s98
      %p110 = scmp.eq.s32.totalorder %s39, 3
      %p111 = por %p109, %p110
      %p113 = scmp.ne.s32.totalorder %s98, %s112
      %p114 = scmp.eq.s32.totalorder %s39, 0
      %p115 = por %p113, %p114
      %s117 = sadd.s32 %s116, 1
      %p120 = scmp.eq.s32.totalorder %s33, 3
      %p121 = scmp.ne.s32.totalorder %s116, %s118
      %p122 = scmp.eq.s32.totalorder %s33, 0
      %p123 = por %p121, %p122
      %p124 = scmp.ne.s32.totalorder %s116, %s118
      %p125 = scmp.eq.s32.totalorder %s38, 3
      %p126 = por %p124, %p125
      %p127 = scmp.ne.s32.totalorder %s118, %s119
      %p128 = scmp.eq.s32.totalorder %s38, 0
      %p129 = por %p127, %p128
      %p130 = scmp.ne.s32.totalorder %s118, %s119
      %p131 = scmp.eq.s32.totalorder %s39, 3
      %p132 = por %p130, %p131
      %p134 = scmp.ne.s32.totalorder %s119, %s133
      %p135 = scmp.eq.s32.totalorder %s39, 0
      %p136 = por %p134, %p135
      %s137 = ssub.s32 %s40, %s52
      %s138 = ssub.s32 %s41, %s48
      %s139 = sor.u32 %s137, %s138
      %p140 = scmp.eq.s32.totalorder %s139, 0
      %s142 = sadd.s32 %s141, 1
      %s143 = scalar_select %p140, %s141, %s142
      %p146 = pneg %p140
      %p147 = scmp.eq.s32.totalorder %s33, 3
      %p148 = por %p146, %p147
      %p149 = scmp.ne.s32.totalorder %s141, %s144
      %p150 = scmp.eq.s32.totalorder %s33, 0
      %p151 = por %p149, %p150
      %p152 = scmp.ne.s32.totalorder %s141, %s144
      %p153 = scmp.eq.s32.totalorder %s38, 3
      %p154 = por %p152, %p153
      %p155 = scmp.ne.s32.totalorder %s144, %s145
      %p156 = scmp.eq.s32.totalorder %s38, 0
      %p157 = por %p155, %p156
      %p158 = scmp.ne.s32.totalorder %s144, %s145
      %p159 = scmp.eq.s32.totalorder %s39, 3
      %p160 = por %p158, %p159
      %p162 = scmp.ne.s32.totalorder %s145, %s161
      %p163 = scmp.eq.s32.totalorder %s39, 0
      %p164 = por %p162, %p163
      %s165 = ssub.s32 %s40, %s52
      %s166 = ssub.s32 %s41, %s48
      %s167 = sor.u32 %s165, %s166
      %p168 = scmp.eq.s32.totalorder %s167, 0
      %s170 = sadd.s32 %s169, 1
      %s171 = scalar_select %p168, %s169, %s170
      %p174 = pneg %p168
      %p175 = scmp.eq.s32.totalorder %s33, 3
      %p176 = por %p174, %p175
      %p177 = scmp.ne.s32.totalorder %s169, %s172
      %p178 = scmp.eq.s32.totalorder %s33, 0
      %p179 = por %p177, %p178
      %p180 = scmp.ne.s32.totalorder %s169, %s172
      %p181 = scmp.eq.s32.totalorder %s38, 3
      %p182 = por %p180, %p181
      %p183 = scmp.ne.s32.totalorder %s172, %s173
      %p184 = scmp.eq.s32.totalorder %s38, 0
      %p185 = por %p183, %p184
      %p186 = scmp.ne.s32.totalorder %s172, %s173
      %p187 = scmp.eq.s32.totalorder %s39, 3
      %p188 = por %p186, %p187
      %p190 = scmp.ne.s32.totalorder %s173, %s189
      %p191 = scmp.eq.s32.totalorder %s39, 0
      %p192 = por %p190, %p191
      %s193 = ssub.s32 %s40, %s52
      %s194 = ssub.s32 %s41, %s48
      %s195 = sor.u32 %s193, %s194
      %p196 = scmp.eq.s32.totalorder %s195, 0
      %s198 = sadd.s32 %s197, 1
      %s199 = scalar_select %p196, %s197, %s198
      %p202 = pneg %p196
      %p203 = scmp.eq.s32.totalorder %s33, 3
      %p204 = por %p202, %p203
      %p205 = scmp.ne.s32.totalorder %s197, %s200
      %p206 = scmp.eq.s32.totalorder %s33, 0
      %p207 = por %p205, %p206
      %p208 = scmp.ne.s32.totalorder %s197, %s200
      %p209 = scmp.eq.s32.totalorder %s38, 3
      %p210 = por %p208, %p209
      %p211 = scmp.ne.s32.totalorder %s200, %s201
      %p212 = scmp.eq.s32.totalorder %s38, 0
      %p213 = por %p211, %p212
      %p214 = scmp.ne.s32.totalorder %s200, %s201
      %p215 = scmp.eq.s32.totalorder %s39, 3
      %p216 = por %p214, %p215
      %p218 = scmp.ne.s32.totalorder %s201, %s217
      %p219 = scmp.eq.s32.totalorder %s39, 0
      %p220 = por %p218, %p219
      %s221 = ssub.s32 %s40, %s52
      %s222 = ssub.s32 %s41, %s48
      %s223 = sor.u32 %s221, %s222
      %p224 = scmp.eq.s32.totalorder %s223, 0
      %s226 = sadd.s32 %s225, 1
      %s227 = scalar_select %p224, %s225, %s226
      %p230 = pneg %p224
      %p231 = scmp.eq.s32.totalorder %s33, 3
      %p232 = por %p230, %p231
      %p233 = scmp.ne.s32.totalorder %s225, %s228
      %p234 = scmp.eq.s32.totalorder %s33, 0
      %p235 = por %p233, %p234
      %p236 = scmp.ne.s32.totalorder %s225, %s228
      %p237 = scmp.eq.s32.totalorder %s38, 3
      %p238 = por %p236, %p237
      %p239 = scmp.ne.s32.totalorder %s228, %s229
      %p240 = scmp.eq.s32.totalorder %s38, 0
      %p241 = por %p239, %p240
      %p242 = scmp.ne.s32.totalorder %s228, %s229
      %p243 = scmp.eq.s32.totalorder %s39, 3
      %p244 = por %p242, %p243
      %p246 = scmp.ne.s32.totalorder %s229, %s245
      %p247 = scmp.eq.s32.totalorder %s39, 0
      %p248 = por %p246, %p247
      %s249 = ssub.s32 %s40, %s52
      %s250 = ssub.s32 %s41, %s48
      %s251 = sor.u32 %s249, %s250
      %p252 = scmp.eq.s32.totalorder %s251, 0
      %s254 = sadd.s32 %s253, 1
      %s255 = scalar_select %p252, %s253, %s254
      %p258 = pneg %p252
      %p259 = scmp.eq.s32.totalorder %s33, 3
      %p260 = por %p258, %p259
      %p261 = scmp.ne.s32.totalorder %s253, %s256
      %p262 = scmp.eq.s32.totalorder %s33, 0
      %p263 = por %p261, %p262
      %p264 = scmp.ne.s32.totalorder %s253, %s256
      %p265 = scmp.eq.s32.totalorder %s38, 3
      %p266 = por %p264, %p265
      %p267 = scmp.ne.s32.totalorder %s256, %s257
      %p268 = scmp.eq.s32.totalorder %s38, 0
      %p269 = por %p267, %p268
      %p270 = scmp.ne.s32.totalorder %s256, %s257
      %p271 = scmp.eq.s32.totalorder %s39, 3
      %p272 = por %p270, %p271
      %p274 = scmp.ne.s32.totalorder %s257, %s273
      %p275 = scmp.eq.s32.totalorder %s39, 0
      %p276 = por %p274, %p275
      %s277 = ssub.s32 %s40, %s52
      %p278 = scmp.eq.s32.totalorder %s277, 0
      %s280 = sadd.s32 %s279, 1
      %s281 = scalar_select %p278, %s279, %s280
      %p284 = pneg %p278
      %p285 = scmp.eq.s32.totalorder %s33, 3
      %p286 = por %p284, %p285
      %p287 = scmp.ne.s32.totalorder %s279, %s282
      %p288 = scmp.eq.s32.totalorder %s33, 0
      %p289 = por %p287, %p288
      %p290 = scmp.ne.s32.totalorder %s279, %s282
      %p291 = scmp.eq.s32.totalorder %s38, 3
      %p292 = por %p290, %p291
      %p293 = scmp.ne.s32.totalorder %s282, %s283
      %p294 = scmp.eq.s32.totalorder %s38, 0
      %p295 = por %p293, %p294
      %p296 = scmp.ne.s32.totalorder %s282, %s283
      %p297 = scmp.eq.s32.totalorder %s39, 3
      %p298 = por %p296, %p297
      %p300 = scmp.ne.s32.totalorder %s283, %s299
      %p301 = scmp.eq.s32.totalorder %s39, 0
      %p302 = por %p300, %p301
      %s303 = ssub.s32 %s40, %s52
      %p304 = scmp.eq.s32.totalorder %s303, 0
      %s306 = sadd.s32 %s305, 1
      %s307 = scalar_select %p304, %s305, %s306
      %p310 = pneg %p304
      %p311 = scmp.eq.s32.totalorder %s33, 3
      %p312 = por %p310, %p311
      %p313 = scmp.ne.s32.totalorder %s305, %s308
      %p314 = scmp.eq.s32.totalorder %s33, 0
      %p315 = por %p313, %p314
      %p316 = scmp.ne.s32.totalorder %s305, %s308
      %p317 = scmp.eq.s32.totalorder %s38, 3
      %p318 = por %p316, %p317
      %p319 = scmp.ne.s32.totalorder %s308, %s309
      %p320 = scmp.eq.s32.totalorder %s38, 0
      %p321 = por %p319, %p320
      %p322 = scmp.ne.s32.totalorder %s308, %s309
      %p323 = scmp.eq.s32.totalorder %s39, 3
      %p324 = por %p322, %p323
      %p326 = scmp.ne.s32.totalorder %s309, %s325
      %p327 = scmp.eq.s32.totalorder %s39, 0
      %p328 = por %p326, %p327
      %s329 = ssub.s32 %s40, %s52
      %p330 = scmp.eq.s32.totalorder %s329, 0
      %s332 = sadd.s32 %s331, 1
      %s333 = scalar_select %p330, %s331, %s332
      %p336 = pneg %p330
      %p337 = scmp.eq.s32.totalorder %s33, 3
      %p338 = por %p336, %p337
      %p339 = scmp.ne.s32.totalorder %s331, %s334
      %p340 = scmp.eq.s32.totalorder %s33, 0
      %p341 = por %p339, %p340
      %p342 = scmp.ne.s32.totalorder %s331, %s334
      %p343 = scmp.eq.s32.totalorder %s38, 3
      %p344 = por %p342, %p343
      %p345 = scmp.ne.s32.totalorder %s334, %s335
      %p346 = scmp.eq.s32.totalorder %s38, 0
      %p347 = por %p345, %p346
      %p348 = scmp.ne.s32.totalorder %s334, %s335
      %p349 = scmp.eq.s32.totalorder %s39, 3
      %p350 = por %p348, %p349
      %p352 = scmp.ne.s32.totalorder %s335, %s351
      %p353 = scmp.eq.s32.totalorder %s39, 0
      %p354 = por %p352, %p353
      %p355 = scmp.le.s32.totalorder 1, %s33
      %p356 = scmp.lt.s32.totalorder %s33, 5
      %p357 = pnand %p355, %p356
      %p358 = pneg %p357
      // Predicated region
      $region9: #{tpu_custom_call.1} parent=5 // pred_check
        _
      $region10: #{tpu_custom_call.1} parent=5 // pred_check_branch
        %360 = sbr.rel (%p357) target = $region12
      $region11: #{tpu_custom_call.1} parent=5 // pred_region
        %s361 = ssub.s32 %s33, 1
        // Predicated region
        $region13: #{tpu_custom_call.1} parent=11 // pred_check
          %p362 = pneg %p66
        $region14: #{tpu_custom_call.1} parent=11 // pred_check_branch
          %364 = sbr.rel (%p362) target = $region16
        $region15: #{tpu_custom_call.1} parent=11 // pred_region
          %366 = vsyncadd [#allocation5], 0
          %s368 = sshll.u32 %s0, 4
          %s369 = int_to_ptr.vmem [resolvable:$true] %s368
          %371 = dma.vmem_to_smem %s369, 32, [#allocation2], [#allocation5]
        $region16: #{tpu_custom_call.1} parent=11 // pred_fallthru
          _
        // Predicated region
        $region17: #{tpu_custom_call.1} parent=11 // pred_check
          %p372 = pneg %p87
        $region18: #{tpu_custom_call.1} parent=11 // pred_check_branch
          %374 = sbr.rel (%p372) target = $region20
        $region19: #{tpu_custom_call.1} parent=11 // pred_region
          %376 = vsyncadd [#allocation7], 0
          %s378 = sshll.u32 %s1, 4
          %s379 = int_to_ptr.vmem [resolvable:$true] %s378
          %381 = dma.vmem_to_smem %s379, 32, [#allocation6], [#allocation7]
        $region20: #{tpu_custom_call.1} parent=11 // pred_fallthru
          _
        // Predicated region
        $region21: #{tpu_custom_call.1} parent=11 // pred_check
          %p382 = pneg %p108
        $region22: #{tpu_custom_call.1} parent=11 // pred_check_branch
          %384 = sbr.rel (%p382) target = $region24
        $region23: #{tpu_custom_call.1} parent=11 // pred_region
          %386 = vsyncadd [#allocation7], 0
          %s388 = sshll.u32 %s2, 4
          %s389 = int_to_ptr.vmem [resolvable:$true] %s388
          %391 = dma.vmem_to_smem %s389, 128, [#allocation8], [#allocation7]
        $region24: #{tpu_custom_call.1} parent=11 // pred_fallthru
          _
        // Predicated region
        $region25: #{tpu_custom_call.1} parent=11 // pred_check
          %p392 = pneg %p129
        $region26: #{tpu_custom_call.1} parent=11 // pred_check_branch
          %394 = sbr.rel (%p392) target = $region28
        $region27: #{tpu_custom_call.1} parent=11 // pred_region
          %396 = vsyncadd [#allocation10], 0
          %s398 = sshll.u32 %s3, 4
          %s399 = int_to_ptr.vmem [resolvable:$true] %s398
          %401 = dma.vmem_to_smem %s399, 128, [#allocation9], [#allocation10]
        $region28: #{tpu_custom_call.1} parent=11 // pred_fallthru
          _
      $region12: #{tpu_custom_call.1} parent=5 // pred_fallthru
        _
      %p402 = scmp.lt.s32.totalorder %s33, 4
      // Predicated region
      $region29: #{tpu_custom_call.1} parent=5 // pred_check
        %p403 = pneg %p402
      $region30: #{tpu_custom_call.1} parent=5 // pred_check_branch
        %405 = sbr.rel (%p403) target = $region32
      $region31: #{tpu_custom_call.1} parent=5 // pred_region
        // Predicated region
        $region33: #{tpu_custom_call.1} parent=31 // pred_check
          %p406 = pneg %p151
        $region34: #{tpu_custom_call.1} parent=31 // pred_check_branch
          %408 = sbr.rel (%p406) target = $region36
        $region35: #{tpu_custom_call.1} parent=31 // pred_region
          %s409 = sand.u32 %s141, 1
          %s410 = scalar_lea.sflag [#allocation3], %s409
          %s411 = sand.u32 %s141, 1
          %s412 = smul.addr %s411, 32
          %s413 = scalar_lea.vmem [#allocation11], %s412
          %415 = vsyncadd %s410, 0
          %s416 = smul.addr %s40, 8
          %s417 = sadd.s32 %s41, %s416
          %s418 = smul.addr %s417, 8
          %s419 = scalar_lea.hbm %s4, %s418
          %s420 = sshll.u32 %s419, 4
          %s421 = int_to_ptr.hbm [resolvable:$true] %s420
          %s422 = sshll.u32 %s413, 4
          %s423 = int_to_ptr.vmem [resolvable:$true] %s422
          %428 = dma.hbm_to_vmem [thread:$0]  %s421, 512, %s423, %s410, 256, 128, 8
        $region36: #{tpu_custom_call.1} parent=31 // pred_fallthru
          _
        // Predicated region
        $region37: #{tpu_custom_call.1} parent=31 // pred_check
          %p429 = pneg %p179
        $region38: #{tpu_custom_call.1} parent=31 // pred_check_branch
          %431 = sbr.rel (%p429) target = $region40
        $region39: #{tpu_custom_call.1} parent=31 // pred_region
          %s432 = sand.u32 %s33, 1
          %s433 = scalar_lea.sflag [#allocation13], %s432
          %s434 = sand.u32 %s169, 1
          %s435 = smul.addr %s434, 64
          %s436 = scalar_lea.vmem [#allocation12], %s435
          %438 = vsyncadd %s433, 0
          %s439 = smul.addr %s40, 16
          %s440 = sadd.s32 %s41, %s439
          %s441 = smul.addr %s440, 8
          %s442 = scalar_lea.hbm %s5, %s441
          %s443 = sshll.u32 %s442, 4
          %s444 = int_to_ptr.hbm [resolvable:$true] %s443
          %s445 = sshll.u32 %s436, 4
          %s446 = int_to_ptr.vmem [resolvable:$true] %s445
          %451 = dma.hbm_to_vmem [thread:$0]  %s444, 1024, %s446, %s433, 256, 128, 8
        $region40: #{tpu_custom_call.1} parent=31 // pred_fallthru
          _
        // Predicated region
        $region41: #{tpu_custom_call.1} parent=31 // pred_check
          %p452 = pneg %p207
        $region42: #{tpu_custom_call.1} parent=31 // pred_check_branch
          %454 = sbr.rel (%p452) target = $region44
        $region43: #{tpu_custom_call.1} parent=31 // pred_region
          %s455 = sand.u32 %s33, 1
          %s456 = scalar_lea.sflag [#allocation13], %s455
          %s457 = sand.u32 %s197, 1
          %s458 = smul.addr %s457, 8
          %s459 = scalar_lea.vmem [#allocation14], %s458
          %461 = vsyncadd %s456, 0
          %s462 = smul.addr %s40, 2
          %s463 = sadd.s32 %s41, %s462
          %s464 = smul.addr %s463, 8
          %s465 = scalar_lea.hbm %s6, %s464
          %s467 = sshll.u32 %s465, 4
          %s468 = int_to_ptr.hbm [resolvable:$true] %s467
          %s469 = sshll.u32 %s459, 4
          %s470 = int_to_ptr.vmem [resolvable:$true] %s469
          %472 = dma.hbm_to_vmem [thread:$0]  %s468, 128, %s470, %s456
        $region44: #{tpu_custom_call.1} parent=31 // pred_fallthru
          _
      $region32: #{tpu_custom_call.1} parent=5 // pred_fallthru
        _
      %p473 = scmp.le.s32.totalorder 1, %s33
      %p474 = scmp.lt.s32.totalorder %s33, 5
      %p475 = pnand %p473, %p474
      %p476 = pneg %p475
      // Predicated region
      $region45: #{tpu_custom_call.1} parent=5 // pred_check
        _
      $region46: #{tpu_custom_call.1} parent=5 // pred_check_branch
        %478 = sbr.rel (%p475) target = $region48
      $region47: #{tpu_custom_call.1} parent=5 // pred_region
        %s479 = ssub.s32 %s33, 1
        // Predicated region
        $region49: #{tpu_custom_call.1} parent=47 // pred_check
          %p480 = pneg %p66
        $region50: #{tpu_custom_call.1} parent=47 // pred_check_branch
          %482 = sbr.rel (%p480) target = $region52
        $region51: #{tpu_custom_call.1} parent=47 // pred_region
          %484 = dma.done [#allocation5], 32
        $region52: #{tpu_custom_call.1} parent=47 // pred_fallthru
          _
        // Predicated region
        $region53: #{tpu_custom_call.1} parent=47 // pred_check
          %p485 = pneg %p87
        $region54: #{tpu_custom_call.1} parent=47 // pred_check_branch
          %487 = sbr.rel (%p485) target = $region56
        $region55: #{tpu_custom_call.1} parent=47 // pred_region
          %489 = dma.done [#allocation7], 32
        $region56: #{tpu_custom_call.1} parent=47 // pred_fallthru
          _
        // Predicated region
        $region57: #{tpu_custom_call.1} parent=47 // pred_check
          %p490 = pneg %p108
        $region58: #{tpu_custom_call.1} parent=47 // pred_check_branch
          %492 = sbr.rel (%p490) target = $region60
        $region59: #{tpu_custom_call.1} parent=47 // pred_region
          %494 = dma.done [#allocation7], 128
        $region60: #{tpu_custom_call.1} parent=47 // pred_fallthru
          _
        // Predicated region
        $region61: #{tpu_custom_call.1} parent=47 // pred_check
          %p495 = pneg %p129
        $region62: #{tpu_custom_call.1} parent=47 // pred_check_branch
          %497 = sbr.rel (%p495) target = $region64
        $region63: #{tpu_custom_call.1} parent=47 // pred_region
          %499 = dma.done [#allocation10], 128
        $region64: #{tpu_custom_call.1} parent=47 // pred_fallthru
          _
        %s500 = sand.u32 %s144, 1
        %s501 = scalar_lea.sflag [#allocation3], %s500
        %s502 = sand.u32 %s144, 1
        %s503 = smul.addr %s502, 32
        %s504 = scalar_lea.vmem [#allocation11], %s503
        // Predicated region
        $region65: #{tpu_custom_call.1} parent=47 // pred_check
          %p505 = pneg %p157
        $region66: #{tpu_custom_call.1} parent=47 // pred_check_branch
          %507 = sbr.rel (%p505) target = $region68
        $region67: #{tpu_custom_call.1} parent=47 // pred_region
          %509 = dma.done %s501, 512
        $region68: #{tpu_custom_call.1} parent=47 // pred_fallthru
          _
        %s510 = sand.u32 %s38, 1
        %s511 = scalar_lea.sflag [#allocation13], %s510
        %s512 = sand.u32 %s172, 1
        %s513 = smul.addr %s512, 64
        %s514 = scalar_lea.vmem [#allocation12], %s513
        // Predicated region
        $region69: #{tpu_custom_call.1} parent=47 // pred_check
          %p515 = pneg %p185
        $region70: #{tpu_custom_call.1} parent=47 // pred_check_branch
          %517 = sbr.rel (%p515) target = $region72
        $region71: #{tpu_custom_call.1} parent=47 // pred_region
          %519 = dma.done %s511, 1024
        $region72: #{tpu_custom_call.1} parent=47 // pred_fallthru
          _
        %s520 = sand.u32 %s38, 1
        %s521 = scalar_lea.sflag [#allocation13], %s520
        %s522 = sand.u32 %s200, 1
        %s523 = smul.addr %s522, 8
        %s524 = scalar_lea.vmem [#allocation14], %s523
        // Predicated region
        $region73: #{tpu_custom_call.1} parent=47 // pred_check
          %p525 = pneg %p213
        $region74: #{tpu_custom_call.1} parent=47 // pred_check_branch
          %527 = sbr.rel (%p525) target = $region76
        $region75: #{tpu_custom_call.1} parent=47 // pred_region
          %529 = dma.done %s521, 128
        $region76: #{tpu_custom_call.1} parent=47 // pred_fallthru
          _
        %530 = sfence
        %p531 = pneg %p66
        %p532 = pneg %p63
        %p533 = pneg %p87
        %p534 = pneg %p84
        %p535 = pneg %p108
        %p536 = pneg %p105
        %p537 = pneg %p129
        %p538 = pneg %p126
        %s539 = sand.u32 %s144, 1
        %s540 = scalar_lea.sflag [#allocation3], %s539
        %s541 = sand.u32 %s144, 1
        %s542 = smul.addr %s541, 32
        %s543 = scalar_lea.vmem [#allocation11], %s542
        %p544 = pneg %p157
        %p545 = pneg %p154
        %s546 = sand.u32 %s38, 1
        %s547 = scalar_lea.sflag [#allocation13], %s546
        %s548 = sand.u32 %s172, 1
        %s549 = smul.addr %s548, 64
        %s550 = scalar_lea.vmem [#allocation12], %s549
        %p551 = pneg %p185
        %p552 = pneg %p182
        %s553 = sand.u32 %s38, 1
        %s554 = scalar_lea.sflag [#allocation13], %s553
        %s555 = sand.u32 %s200, 1
        %s556 = smul.addr %s555, 8
        %s557 = scalar_lea.vmem [#allocation14], %s556
        %p558 = pneg %p213
        %p559 = pneg %p210
        %p560 = pneg %p241
        %p561 = pneg %p238
        %s562 = sand.u32 %s228, 1
        %s563 = scalar_lea.sflag [#allocation4], %s562
        %s564 = sand.u32 %s228, 1
        %s565 = smul.addr %s564, 16
        %s566 = scalar_lea.vmem [#allocation15], %s565
        %p567 = pneg %p269
        %p568 = pneg %p266
        %s569 = sand.u32 %s256, 1
        %s570 = scalar_lea.sflag [#allocation17], %s569
        %s571 = sand.u32 %s256, 1
        %s572 = smul.addr %s571, 64
        %s573 = scalar_lea.vmem [#allocation16], %s572
        %p574 = pneg %p295
        %p575 = pneg %p292
        %p576 = scmp.lt.s32.totalorder %s42, 1
        %s577 = scalar_select %p576, %s42, 1
        %s578 = scalar_lea.vmem %s9, %s577
        %p579 = pneg %p321
        %p580 = pneg %p318
        %p581 = scmp.lt.s32.totalorder %s42, 1
        %s582 = scalar_select %p581, %s42, 1
        %s583 = scalar_lea.vmem %s10, %s582
        %p584 = pneg %p347
        %p585 = pneg %p344
        %p586 = scmp.lt.s32.totalorder %s42, 1
        %s587 = scalar_select %p586, %s42, 1
        %s588 = scalar_lea.vmem %s11, %s587
        %p589 = scmp.lt.s32.totalorder %s42, 1
        %s590 = scalar_select %p589, %s42, 1
        %s591 = scalar_lea.vmem %s9, %s590
        %p592 = scmp.lt.s32.totalorder %s42, 1
        %s593 = scalar_select %p592, %s42, 1
        %s594 = scalar_lea.vmem %s10, %s593
        %p595 = scmp.lt.s32.totalorder %s42, 1
        %s596 = scalar_select %p595, %s42, 1
        %s597 = scalar_lea.vmem %s11, %s596
        %p598 = scmp.eq.s32.totalorder %s43, 0
        // Predicated region
        $region77: #{tpu_custom_call.1} parent=47 // pred_check
          %p599 = pneg %p598
        $region78: #{tpu_custom_call.1} parent=47 // pred_check_branch
          %601 = sbr.rel (%p599) target = $region80
        $region79: #{tpu_custom_call.1} parent=47 // pred_region
          %vm602 = vcmask 0
          %603 = vst.msk [vmem:[%s591] sm:$0x1] %vm602, 0.0
          %604 = vst.msk [vmem:[%s594] sm:$0x1] %vm602, 0.0
          %605 = vst.msk [vmem:[%s597] sm:$0x1] %vm602, 0.0
        $region80: #{tpu_custom_call.1} parent=47 // pred_fallthru
          _
        %v606 = vld [vmem:[%s524] sm:$0xff]
        %v607 = vcvt.s32.f32 %v606
        %v608 = vld [vmem:[%s504] sm:$0xff]
        %s609 = scalar_lea.vmem %s504, 8 [#allocation11]
        %v610 = vld [vmem:[%s609] sm:$0xff]
        %s611 = scalar_lea.vmem %s504, 16 [#allocation11]
        %v612 = vld [vmem:[%s611] sm:$0xff]
        %s613 = scalar_lea.vmem %s504, 24 [#allocation11]
        %v614 = vld [vmem:[%s613] sm:$0xff]
        %s615 = sld [smem:[#allocation2]]
        %v616 = vstv %s615
        %v617 = vmul.f32 %v608, %v616
        %s618 = sld [smem:[#allocation6]]
        %v619 = vstv %s618
        %v620 = vadd.f32 %v617, %v619
        %s621 = sld [smem:[#allocation2 + $0x1]]
        %v622 = vstv %s621
        %v623 = vmul.f32 %v610, %v622
        %v624 = vadd.f32 %v620, %v623
        %s625 = sld [smem:[#allocation2 + $0x2]]
        %v626 = vstv %s625
        %v627 = vmul.f32 %v612, %v626
        %v628 = vadd.f32 %v624, %v627
        %s629 = sld [smem:[#allocation2 + $0x3]]
        %v630 = vstv %s629
        %v631 = vmul.f32 %v614, %v630
        %v632 = vadd.f32 %v628, %v631
        %s633 = sld [smem:[#allocation2 + $0x80]]
        %v634 = vstv %s633
        %v635 = vmul.f32 %v608, %v634
        %s636 = sld [smem:[#allocation6 + $0x80]]
        %v637 = vstv %s636
        %v638 = vadd.f32 %v635, %v637
        %s639 = sld [smem:[#allocation2 + $0x81]]
        %v640 = vstv %s639
        %v641 = vmul.f32 %v610, %v640
        %v642 = vadd.f32 %v638, %v641
        %s643 = sld [smem:[#allocation2 + $0x82]]
        %v644 = vstv %s643
        %v645 = vmul.f32 %v612, %v644
        %v646 = vadd.f32 %v642, %v645
        %s647 = sld [smem:[#allocation2 + $0x83]]
        %v648 = vstv %s647
        %v649 = vmul.f32 %v614, %v648
        %v650 = vadd.f32 %v646, %v649
        %vm651 = vcmask 130048
        %652 = vst.msk [vmem:[%s566] sm:$0xff] %vm651, %v632
        %s653 = scalar_lea.vmem %s566, 8 [#allocation15]
        %654 = vst.msk [vmem:[%s653] sm:$0xff] %vm651, %v650
        %s655 = sld [smem:[#allocation8]]
        %v656 = vstv %s655
        %v657 = vmul.f32 %v608, %v656
        %s658 = sld [smem:[#allocation9]]
        %v659 = vstv %s658
        %v660 = vadd.f32 %v657, %v659
        %s661 = sld [smem:[#allocation8 + $0x1]]
        %v662 = vstv %s661
        %v663 = vmul.f32 %v610, %v662
        %v664 = vadd.f32 %v660, %v663
        %s665 = sld [smem:[#allocation8 + $0x2]]
        %v666 = vstv %s665
        %v667 = vmul.f32 %v612, %v666
        %v668 = vadd.f32 %v664, %v667
        %s669 = sld [smem:[#allocation8 + $0x3]]
        %v670 = vstv %s669
        %v671 = vmul.f32 %v614, %v670
        %v672 = vadd.f32 %v668, %v671
        %673 = vst.msk [vmem:[%s573] sm:$0xff] %vm651, %v672
        %v674 = vld [vmem:[%s514] sm:$0xff]
        %v675 = vsub.f32 %v672, %v674
        %v676 = vmul.f32 %v675, %v607
        %v677 = vand.u32 2147483647, %v676
        %v678 = vmin.f32 %v677, 1.0
        %v679 = vmul.f32 %v678, 0.5
        %v680 = vsub.f32 %v677, %v679
        %v681 = vmul.f32 %v678, %v680
        %v682 = vadd.f32 %v681, 0.0
        %s683 = sld [smem:[#allocation8 + $0x80]]
        %v684 = vstv %s683
        %v685 = vmul.f32 %v608, %v684
        %s686 = sld [smem:[#allocation9 + $0x80]]
        %v687 = vstv %s686
        %v688 = vadd.f32 %v685, %v687
        %s689 = sld [smem:[#allocation8 + $0x81]]
        %v690 = vstv %s689
        %v691 = vmul.f32 %v610, %v690
        %v692 = vadd.f32 %v688, %v691
        %s693 = sld [smem:[#allocation8 + $0x82]]
        %v694 = vstv %s693
        %v695 = vmul.f32 %v612, %v694
        %v696 = vadd.f32 %v692, %v695
        %s697 = sld [smem:[#allocation8 + $0x83]]
        %v698 = vstv %s697
        %v699 = vmul.f32 %v614, %v698
        %v700 = vadd.f32 %v696, %v699
        %s701 = scalar_lea.vmem %s573, 8 [#allocation16]
        %702 = vst.msk [vmem:[%s701] sm:$0xff] %vm651, %v700
        %s703 = scalar_lea.vmem %s514, 8 [#allocation12]
        %v704 = vld [vmem:[%s703] sm:$0xff]
        %v705 = vsub.f32 %v700, %v704
        %v706 = vmul.f32 %v705, %v607
        %v707 = vand.u32 2147483647, %v706
        %v708 = vmin.f32 %v707, 1.0
        %v709 = vmul.f32 %v708, 0.5
        %v710 = vsub.f32 %v707, %v709
        %v711 = vmul.f32 %v708, %v710
        %v712 = vadd.f32 %v682, %v711
        %s713 = sld [smem:[#allocation8 + $0x100]]
        %v714 = vstv %s713
        %v715 = vmul.f32 %v608, %v714
        %s716 = sld [smem:[#allocation9 + $0x100]]
        %v717 = vstv %s716
        %v718 = vadd.f32 %v715, %v717
        %s719 = sld [smem:[#allocation8 + $0x101]]
        %v720 = vstv %s719
        %v721 = vmul.f32 %v610, %v720
        %v722 = vadd.f32 %v718, %v721
        %s723 = sld [smem:[#allocation8 + $0x102]]
        %v724 = vstv %s723
        %v725 = vmul.f32 %v612, %v724
        %v726 = vadd.f32 %v722, %v725
        %s727 = sld [smem:[#allocation8 + $0x103]]
        %v728 = vstv %s727
        %v729 = vmul.f32 %v614, %v728
        %v730 = vadd.f32 %v726, %v729
        %s731 = scalar_lea.vmem %s573, 16 [#allocation16]
        %732 = vst.msk [vmem:[%s731] sm:$0xff] %vm651, %v730
        %s733 = scalar_lea.vmem %s514, 16 [#allocation12]
        %v734 = vld [vmem:[%s733] sm:$0xff]
        %v735 = vsub.f32 %v730, %v734
        %v736 = vmul.f32 %v735, %v607
        %v737 = vand.u32 2147483647, %v736
        %v738 = vmin.f32 %v737, 1.0
        %v739 = vmul.f32 %v738, 0.5
        %v740 = vsub.f32 %v737, %v739
        %v741 = vmul.f32 %v738, %v740
        %v742 = vadd.f32 %v712, %v741
        %s743 = sld [smem:[#allocation8 + $0x180]]
        %v744 = vstv %s743
        %v745 = vmul.f32 %v608, %v744
        %s746 = sld [smem:[#allocation9 + $0x180]]
        %v747 = vstv %s746
        %v748 = vadd.f32 %v745, %v747
        %s749 = sld [smem:[#allocation8 + $0x181]]
        %v750 = vstv %s749
        %v751 = vmul.f32 %v610, %v750
        %v752 = vadd.f32 %v748, %v751
        %s753 = sld [smem:[#allocation8 + $0x182]]
        %v754 = vstv %s753
        %v755 = vmul.f32 %v612, %v754
        %v756 = vadd.f32 %v752, %v755
        %s757 = sld [smem:[#allocation8 + $0x183]]
        %v758 = vstv %s757
        %v759 = vmul.f32 %v614, %v758
        %v760 = vadd.f32 %v756, %v759
        %s761 = scalar_lea.vmem %s573, 24 [#allocation16]
        %762 = vst.msk [vmem:[%s761] sm:$0xff] %vm651, %v760
        %s763 = scalar_lea.vmem %s514, 24 [#allocation12]
        %v764 = vld [vmem:[%s763] sm:$0xff]
        %v765 = vsub.f32 %v760, %v764
        %v766 = vmul.f32 %v765, %v607
        %v767 = vand.u32 2147483647, %v766
        %v768 = vmin.f32 %v767, 1.0
        %v769 = vmul.f32 %v768, 0.5
        %v770 = vsub.f32 %v767, %v769
        %v771 = vmul.f32 %v768, %v770
        %v772 = vadd.f32 %v742, %v771
        %s773 = sld [smem:[#allocation8 + $0x200]]
        %v774 = vstv %s773
        %v775 = vmul.f32 %v608, %v774
        %s776 = sld [smem:[#allocation9 + $0x200]]
        %v777 = vstv %s776
        %v778 = vadd.f32 %v775, %v777
        %s779 = sld [smem:[#allocation8 + $0x201]]
        %v780 = vstv %s779
        %v781 = vmul.f32 %v610, %v780
        %v782 = vadd.f32 %v778, %v781
        %s783 = sld [smem:[#allocation8 + $0x202]]
        %v784 = vstv %s783
        %v785 = vmul.f32 %v612, %v784
        %v786 = vadd.f32 %v782, %v785
        %s787 = sld [smem:[#allocation8 + $0x203]]
        %v788 = vstv %s787
        %v789 = vmul.f32 %v614, %v788
        %v790 = vadd.f32 %v786, %v789
        %s791 = scalar_lea.vmem %s573, 32 [#allocation16]
        %792 = vst.msk [vmem:[%s791] sm:$0xff] %vm651, %v790
        %s793 = scalar_lea.vmem %s514, 32 [#allocation12]
        %v794 = vld [vmem:[%s793] sm:$0xff]
        %v795 = vsub.f32 %v790, %v794
        %v796 = vmul.f32 %v795, %v607
        %v797 = vand.u32 2147483647, %v796
        %v798 = vmin.f32 %v797, 1.0
        %v799 = vmul.f32 %v798, 0.5
        %v800 = vsub.f32 %v797, %v799
        %v801 = vmul.f32 %v798, %v800
        %v802 = vadd.f32 %v772, %v801
        %s803 = sld [smem:[#allocation8 + $0x280]]
        %v804 = vstv %s803
        %v805 = vmul.f32 %v608, %v804
        %s806 = sld [smem:[#allocation9 + $0x280]]
        %v807 = vstv %s806
        %v808 = vadd.f32 %v805, %v807
        %s809 = sld [smem:[#allocation8 + $0x281]]
        %v810 = vstv %s809
        %v811 = vmul.f32 %v610, %v810
        %v812 = vadd.f32 %v808, %v811
        %s813 = sld [smem:[#allocation8 + $0x282]]
        %v814 = vstv %s813
        %v815 = vmul.f32 %v612, %v814
        %v816 = vadd.f32 %v812, %v815
        %s817 = sld [smem:[#allocation8 + $0x283]]
        %v818 = vstv %s817
        %v819 = vmul.f32 %v614, %v818
        %v820 = vadd.f32 %v816, %v819
        %s821 = scalar_lea.vmem %s573, 40 [#allocation16]
        %822 = vst.msk [vmem:[%s821] sm:$0xff] %vm651, %v820
        %s823 = scalar_lea.vmem %s514, 40 [#allocation12]
        %v824 = vld [vmem:[%s823] sm:$0xff]
        %v825 = vsub.f32 %v820, %v824
        %v826 = vmul.f32 %v825, %v607
        %v827 = vand.u32 2147483647, %v826
        %v828 = vmin.f32 %v827, 1.0
        %v829 = vmul.f32 %v828, 0.5
        %v830 = vsub.f32 %v827, %v829
        %v831 = vmul.f32 %v828, %v830
        %v832 = vadd.f32 %v802, %v831
        %s833 = sld [smem:[#allocation8 + $0x300]]
        %v834 = vstv %s833
        %v835 = vmul.f32 %v608, %v834
        %s836 = sld [smem:[#allocation9 + $0x300]]
        %v837 = vstv %s836
        %v838 = vadd.f32 %v835, %v837
        %s839 = sld [smem:[#allocation8 + $0x301]]
        %v840 = vstv %s839
        %v841 = vmul.f32 %v610, %v840
        %v842 = vadd.f32 %v838, %v841
        %s843 = sld [smem:[#allocation8 + $0x302]]
        %v844 = vstv %s843
        %v845 = vmul.f32 %v612, %v844
        %v846 = vadd.f32 %v842, %v845
        %s847 = sld [smem:[#allocation8 + $0x303]]
        %v848 = vstv %s847
        %v849 = vmul.f32 %v614, %v848
        %v850 = vadd.f32 %v846, %v849
        %s851 = scalar_lea.vmem %s573, 48 [#allocation16]
        %852 = vst.msk [vmem:[%s851] sm:$0xff] %vm651, %v850
        %s853 = scalar_lea.vmem %s514, 48 [#allocation12]
        %v854 = vld [vmem:[%s853] sm:$0xff]
        %v855 = vsub.f32 %v850, %v854
        %v856 = vmul.f32 %v855, %v607
        %v857 = vand.u32 2147483647, %v856
        %v858 = vmin.f32 %v857, 1.0
        %v859 = vmul.f32 %v858, 0.5
        %v860 = vsub.f32 %v857, %v859
        %v861 = vmul.f32 %v858, %v860
        %v862 = vadd.f32 %v832, %v861
        %s863 = sld [smem:[#allocation8 + $0x380]]
        %v864 = vstv %s863
        %v865 = vmul.f32 %v608, %v864
        %s866 = sld [smem:[#allocation9 + $0x380]]
        %v867 = vstv %s866
        %v868 = vadd.f32 %v865, %v867
        %s869 = sld [smem:[#allocation8 + $0x381]]
        %v870 = vstv %s869
        %v871 = vmul.f32 %v610, %v870
        %v872 = vadd.f32 %v868, %v871
        %s873 = sld [smem:[#allocation8 + $0x382]]
        %v874 = vstv %s873
        %v875 = vmul.f32 %v612, %v874
        %v876 = vadd.f32 %v872, %v875
        %s877 = sld [smem:[#allocation8 + $0x383]]
        %v878 = vstv %s877
        %v879 = vmul.f32 %v614, %v878
        %v880 = vadd.f32 %v876, %v879
        %s881 = scalar_lea.vmem %s573, 56 [#allocation16]
        %882 = vst.msk [vmem:[%s881] sm:$0xff] %vm651, %v880
        %s883 = scalar_lea.vmem %s514, 56 [#allocation12]
        %v884 = vld [vmem:[%s883] sm:$0xff]
        %v885 = vsub.f32 %v880, %v884
        %v886 = vmul.f32 %v885, %v607
        %v887 = vand.u32 2147483647, %v886
        %v888 = vmin.f32 %v887, 1.0
        %v889 = vmul.f32 %v888, 0.5
        %v890 = vsub.f32 %v887, %v889
        %v891 = vmul.f32 %v888, %v890
        %v892 = vadd.f32 %v862, %v891
        %vm893 = vcmp.ne.f32.partialorder %v607, 0.0
        %v894 = vsub.f32 %v632, %v650
        %v895 = vsub.f32 %v650, %v632
        %v896 = vsel %vm893, %v894, %v895
        %v897 = vmax.f32 %v896, 0.0
        %v898 = vand.u32 2147483647, %v896
        %v899 = vsub.f32 0.0, %v898
        %v900 = vmul.f32 %v899, 1.442695
        %v901 = vpow.pop %v900
        %v902 = vadd.f32 %v901, 1.0
        %v903 = vlog2.pop %v902
        %v904 = vmul.f32 %v903, 0.6931472
        %v905 = vadd.f32 %v897, %v904
        %v906 = vld [vmem:[%s591] sm:$0x1]
        %v907 = vsel %vm651, %v892, 0.0
        %908 = vadd.xlane.f32.xlu0 %v907
        %v909 = vpop.xlane.xlu0 %908
        %v910 = vrot.slane %v909, 4
        %v911 = vadd.f32 %v909, %v910
        %v912 = vrot.slane %v911, 2
        %v913 = vadd.f32 %v911, %v912
        %v914 = vrot.slane %v913, 1
        %v915 = vadd.f32 %v913, %v914
        %s916 = vtos %v915
        %v917 = vstv %s916
        %v918 = vadd.f32 %v906, %v917
        %vm919 = vcmask 0
        %920 = vst.msk [vmem:[%s591] sm:$0x1] %vm919, %v918
        %v921 = vld [vmem:[%s594] sm:$0x1]
        %v922 = vsel %vm651, %v607, 0.0
        %923 = vadd.xlane.f32.xlu0 %v922
        %v924 = vpop.xlane.xlu0 %923
        %v925 = vrot.slane %v924, 4
        %v926 = vadd.f32 %v924, %v925
        %v927 = vrot.slane %v926, 2
        %v928 = vadd.f32 %v926, %v927
        %v929 = vrot.slane %v928, 1
        %v930 = vadd.f32 %v928, %v929
        %s931 = vtos %v930
        %v932 = vstv %s931
        %v933 = vadd.f32 %v921, %v932
        %934 = vst.msk [vmem:[%s594] sm:$0x1] %vm919, %v933
        %v935 = vld [vmem:[%s597] sm:$0x1]
        %v936 = vsel %vm651, %v905, 0.0
        %937 = vadd.xlane.f32.xlu0 %v936
        %v938 = vpop.xlane.xlu0 %937
        %v939 = vrot.slane %v938, 4
        %v940 = vadd.f32 %v938, %v939
        %v941 = vrot.slane %v940, 2
        %v942 = vadd.f32 %v940, %v941
        %v943 = vrot.slane %v942, 1
        %v944 = vadd.f32 %v942, %v943
        %s945 = vtos %v944
        %v946 = vstv %s945
        %v947 = vadd.f32 %v935, %v946
        %948 = vst.msk [vmem:[%s597] sm:$0x1] %vm919, %v947
        %s949 = sand.u32 %s228, 1
        %s950 = scalar_lea.sflag [#allocation4], %s949
        %s951 = sand.u32 %s228, 1
        %s952 = smul.addr %s951, 16
        %s953 = scalar_lea.vmem [#allocation15], %s952
        %s954 = sand.u32 %s256, 1
        %s955 = scalar_lea.sflag [#allocation17], %s954
        %s956 = sand.u32 %s256, 1
        %s957 = smul.addr %s956, 64
        %s958 = scalar_lea.vmem [#allocation16], %s957
        %p959 = scmp.lt.s32.totalorder %s42, 1
        %s960 = scalar_select %p959, %s42, 1
        %s961 = scalar_lea.vmem %s9, %s960
        %p962 = scmp.lt.s32.totalorder %s42, 1
        %s963 = scalar_select %p962, %s42, 1
        %s964 = scalar_lea.vmem %s10, %s963
        %p965 = scmp.lt.s32.totalorder %s42, 1
        %s966 = scalar_select %p965, %s42, 1
        %s967 = scalar_lea.vmem %s11, %s966
        // Predicated region
        $region81: #{tpu_custom_call.1} parent=47 // pred_check
          %p968 = pneg %p238
        $region82: #{tpu_custom_call.1} parent=47 // pred_check_branch
          %970 = sbr.rel (%p968) target = $region84
        $region83: #{tpu_custom_call.1} parent=47 // pred_region
          %972 = vsyncadd %s950, 0
          %s973 = smul.addr %s42, 4
          %s974 = sadd.s32 %s43, %s973
          %s975 = smul.addr %s974, 8
          %s976 = scalar_lea.hbm %s7, %s975
          %s977 = sshll.u32 %s953, 4
          %s978 = int_to_ptr.vmem [resolvable:$true] %s977
          %s979 = sshll.u32 %s976, 4
          %s980 = int_to_ptr.hbm [resolvable:$true] %s979
          %985 = dma.vmem_to_hbm [thread:$0]  %s978, 256, %s980, %s950, 128, 256, 8
        $region84: #{tpu_custom_call.1} parent=47 // pred_fallthru
          _
        // Predicated region
        $region85: #{tpu_custom_call.1} parent=47 // pred_check
          %p986 = pneg %p266
        $region86: #{tpu_custom_call.1} parent=47 // pred_check_branch
          %988 = sbr.rel (%p986) target = $region88
        $region87: #{tpu_custom_call.1} parent=47 // pred_region
          %990 = vsyncadd %s955, 0
          %s991 = smul.addr %s42, 16
          %s992 = sadd.s32 %s43, %s991
          %s993 = smul.addr %s992, 8
          %s994 = scalar_lea.hbm %s8, %s993
          %s995 = sshll.u32 %s958, 4
          %s996 = int_to_ptr.vmem [resolvable:$true] %s995
          %s997 = sshll.u32 %s994, 4
          %s998 = int_to_ptr.hbm [resolvable:$true] %s997
          %1003 = dma.vmem_to_hbm [thread:$0]  %s996, 1024, %s998, %s955, 128, 256, 8
        $region88: #{tpu_custom_call.1} parent=47 // pred_fallthru
          _
        // Predicated region
        $region89: #{tpu_custom_call.1} parent=47 // pred_check
          %p1004 = pneg %p292
        $region90: #{tpu_custom_call.1} parent=47 // pred_check_branch
          %1006 = sbr.rel (%p1004) target = $region92
        $region91: #{tpu_custom_call.1} parent=47 // pred_region
          _
        $region92: #{tpu_custom_call.1} parent=47 // pred_fallthru
          _
        // Predicated region
        $region93: #{tpu_custom_call.1} parent=47 // pred_check
          %p1007 = pneg %p318
        $region94: #{tpu_custom_call.1} parent=47 // pred_check_branch
          %1009 = sbr.rel (%p1007) target = $region96
        $region95: #{tpu_custom_call.1} parent=47 // pred_region
          _
        $region96: #{tpu_custom_call.1} parent=47 // pred_fallthru
          _
        // Predicated region
        $region97: #{tpu_custom_call.1} parent=47 // pred_check
          %p1010 = pneg %p344
        $region98: #{tpu_custom_call.1} parent=47 // pred_check_branch
          %1012 = sbr.rel (%p1010) target = $region100
        $region99: #{tpu_custom_call.1} parent=47 // pred_region
          _
        $region100: #{tpu_custom_call.1} parent=47 // pred_fallthru
          _
      $region48: #{tpu_custom_call.1} parent=5 // pred_fallthru
        _
      %p1013 = scmp.le.s32.totalorder 2, %s33
      // Predicated region
      $region101: #{tpu_custom_call.1} parent=5 // pred_check
        %p1014 = pneg %p1013
      $region102: #{tpu_custom_call.1} parent=5 // pred_check_branch
        %1016 = sbr.rel (%p1014) target = $region104
      $region103: #{tpu_custom_call.1} parent=5 // pred_region
        %s1017 = ssub.s32 %s33, 2
        // Predicated region
        $region105: #{tpu_custom_call.1} parent=103 // pred_check
          %p1018 = pneg %p244
        $region106: #{tpu_custom_call.1} parent=103 // pred_check_branch
          %1020 = sbr.rel (%p1018) target = $region108
        $region107: #{tpu_custom_call.1} parent=103 // pred_region
          %s1021 = sand.u32 %s229, 1
          %s1022 = scalar_lea.sflag [#allocation4], %s1021
          %s1023 = sand.u32 %s229, 1
          %s1024 = smul.addr %s1023, 16
          %s1025 = scalar_lea.vmem [#allocation15], %s1024
          %1027 = dma.done %s1022, 256
        $region108: #{tpu_custom_call.1} parent=103 // pred_fallthru
          _
        // Predicated region
        $region109: #{tpu_custom_call.1} parent=103 // pred_check
          %p1028 = pneg %p272
        $region110: #{tpu_custom_call.1} parent=103 // pred_check_branch
          %1030 = sbr.rel (%p1028) target = $region112
        $region111: #{tpu_custom_call.1} parent=103 // pred_region
          %s1031 = sand.u32 %s257, 1
          %s1032 = scalar_lea.sflag [#allocation17], %s1031
          %s1033 = sand.u32 %s257, 1
          %s1034 = smul.addr %s1033, 64
          %s1035 = scalar_lea.vmem [#allocation16], %s1034
          %1037 = dma.done %s1032, 1024
        $region112: #{tpu_custom_call.1} parent=103 // pred_fallthru
          _
        // Predicated region
        $region113: #{tpu_custom_call.1} parent=103 // pred_check
          %p1038 = pneg %p298
        $region114: #{tpu_custom_call.1} parent=103 // pred_check_branch
          %1040 = sbr.rel (%p1038) target = $region116
        $region115: #{tpu_custom_call.1} parent=103 // pred_region
          %p1041 = scmp.lt.s32.totalorder %s44, 1
          %s1042 = scalar_select %p1041, %s44, 1
          %s1043 = scalar_lea.vmem %s9, %s1042
        $region116: #{tpu_custom_call.1} parent=103 // pred_fallthru
          _
        // Predicated region
        $region117: #{tpu_custom_call.1} parent=103 // pred_check
          %p1044 = pneg %p324
        $region118: #{tpu_custom_call.1} parent=103 // pred_check_branch
          %1046 = sbr.rel (%p1044) target = $region120
        $region119: #{tpu_custom_call.1} parent=103 // pred_region
          %p1047 = scmp.lt.s32.totalorder %s44, 1
          %s1048 = scalar_select %p1047, %s44, 1
          %s1049 = scalar_lea.vmem %s10, %s1048
        $region120: #{tpu_custom_call.1} parent=103 // pred_fallthru
          _
        // Predicated region
        $region121: #{tpu_custom_call.1} parent=103 // pred_check
          %p1050 = pneg %p350
        $region122: #{tpu_custom_call.1} parent=103 // pred_check_branch
          %1052 = sbr.rel (%p1050) target = $region124
        $region123: #{tpu_custom_call.1} parent=103 // pred_region
          %p1053 = scmp.lt.s32.totalorder %s44, 1
          %s1054 = scalar_select %p1053, %s44, 1
          %s1055 = scalar_lea.vmem %s11, %s1054
        $region124: #{tpu_custom_call.1} parent=103 // pred_fallthru
          _
      $region104: #{tpu_custom_call.1} parent=5 // pred_fallthru
        _
    $region6: #{tpu_custom_call.1} parent=1 // loop_footer
      %s37 = sadd.s32 1, %s33
    $region7: #{tpu_custom_call.1} parent=1 // loop_footer_branch
      %32 = sbr.rel target = $region3
    $region8: #{tpu_custom_call.1} parent=1 // loop_exit
      _
    %1056 = vsyncpa [#allocation3], 1
    %s1057 = scalar_lea.sflag [#allocation3], 1
    %1058 = vsyncpa %s1057, 1
    %1059 = vsyncpa [#allocation13], 1
    %s1060 = scalar_lea.sflag [#allocation13], 1
    %1061 = vsyncpa %s1060, 1
    %1062 = vsyncpa [#allocation4], 1
    %s1063 = scalar_lea.sflag [#allocation4], 1
    %1064 = vsyncpa %s1063, 1
    %1065 = vsyncpa [#allocation17], 1
    %s1066 = scalar_lea.sflag [#allocation17], 1
    %1067 = vsyncpa %s1066, 1
    %1068 = vsyncpa [#allocation5], 1
    %s1069 = scalar_lea.sflag [#allocation5], 1
    %1070 = vsyncpa %s1069, 1
    %1071 = vsyncpa [#allocation7], 1
    %1072 = vsyncpa [#allocation10], 1

</llo_original>
